<compile_context>
chip_gen: v7x
topology: tpu7x:2x2x1
jax: 0.10.0
libtpu: 0.0.40
codegen_flags: <defaults>
</compile_context>

<pallas_src>
from functools import partial

import numpy as np
import jax
import jax.numpy as jnp
from jax.experimental import pallas as pl
from jax.experimental.pallas import tpu as pltpu


# ----------------------------- DoG filter build -----------------------------

def _gaussian_taps_1d(size: int, sigma: float):
    """Normalized 1-D Gaussian taps as a tuple of Python floats (static)."""
    coords = np.arange(size, dtype=np.float64) - (size - 1) / 2.0
    g = np.exp(-(coords ** 2) / (2.0 * sigma ** 2))
    g = g / g.sum()
    return tuple(float(v) for v in g)


def make_dog_kernel_2d(size: int, sigma: float, k: float) -> jnp.ndarray:
    """2-D DoG kernel (for the pure-JAX reference check only)."""
    a1 = np.asarray(_gaussian_taps_1d(size, sigma), dtype=np.float64)
    a2 = np.asarray(_gaussian_taps_1d(size, k * sigma), dtype=np.float64)
    return jnp.asarray(np.outer(a1, a1) - np.outer(a2, a2), dtype=jnp.float32)


# ------------------------------- Pallas kernel -------------------------------

def _retina_kernel(x_ref, interest_ref, pos_ref, neg_ref, *, taps1, taps2, ksize):
    # x_ref:        (H, W, Ct)          VMEM  (channels-last folded: lane = C*B block)
    # interest_ref: (2, Ho, Wo, Ct)     VMEM  ([0]=pos, [1]=neg — fused concat)
    # pos_ref:      (Ho, Wo, Ct)        VMEM
    # neg_ref:      (Ho, Wo, Ct)        VMEM
    H, W, Ct = x_ref.shape
    K = ksize
    Ho, Wo = H - K + 1, W - K + 1
    half = K // 2

    # f32 accumulation regardless of I/O dtype.
    x = x_ref[...].astype(jnp.float32)

    # Pass 1: 1-D correlation along W (sublane axis). Symmetric taps: the
    # paired window sum is computed once and shared between BOTH Gaussians.
    y1 = jnp.zeros((H, Wo, Ct), jnp.float32)
    y2 = jnp.zeros((H, Wo, Ct), jnp.float32)
    for j in range(half):
        s = x[:, j:j + Wo, :] + x[:, K - 1 - j:K - 1 - j + Wo, :]
        y1 = y1 + s * taps1[j]          # taps are f32 immediates
        y2 = y2 + s * taps2[j]
    if K % 2 == 1:
        m = x[:, half:half + Wo, :]
        y1 = y1 + m * taps1[half]
        y2 = y2 + m * taps2[half]

    # Pass 2: 1-D correlation along H (major axis -> free addressing), with
    # symmetric-tap pairing and the DoG subtraction fused in.
    acc = jnp.zeros((Ho, Wo, Ct), jnp.float32)
    for i in range(half):
        s1 = y1[i:i + Ho] + y1[K - 1 - i:K - 1 - i + Ho]
        s2 = y2[i:i + Ho] + y2[K - 1 - i:K - 1 - i + Ho]
        acc = acc + (s1 * taps1[i] - s2 * taps2[i])
    if K % 2 == 1:
        acc = acc + (y1[half:half + Ho] * taps1[half]
                     - y2[half:half + Ho] * taps2[half])

    # Half-rectification; the "negative" filter is just the inverted kernel.
    pos = jnp.maximum(acc, 0.0).astype(pos_ref.dtype)
    neg = jnp.maximum(-acc, 0.0).astype(neg_ref.dtype)
    pos_ref[...] = pos
    neg_ref[...] = neg
    interest_ref[0] = pos               # fused channel-concat ([0]=pos, [1]=neg)
    interest_ref[1] = neg


# ------------------------------ VMEM budgeting -------------------------------

def _round_up(x, m):
    return -(-x // m) * m


def _padded_block_bytes(shape, itemsize):
    """VMEM bytes of a block after (sublane, lane) tile padding."""
    sub_mult = {4: 8, 2: 16, 1: 32}.get(itemsize, 8)
    lead = 1
    for d in shape[:-2]:
        lead *= d
    return lead * _round_up(shape[-2], sub_mult) * _round_up(shape[-1], 128) * itemsize


def _vmem_capacity_bytes():
    """Per-core VMEM capacity; conservative 64 MiB (v7x per-TC) fallback."""
    try:
        info = pltpu.get_tpu_info()
        for name in ("vmem_capacity_bytes", "vmem_size_bytes", "vmem_bytes"):
            cap = getattr(info, name, None)
            if cap:
                return int(cap)
    except Exception:
        pass
    return 64 * 1024 * 1024


def _choose_lane_block(CB, H, W, Ho, Wo, itemsize, budget_bytes):
    """Largest lane block (full fold, or a multiple of 128 dividing it) whose
    padded VMEM footprint fits the budget. Fewest grid steps wins (single-TC
    v5e/v6e); if >1 step is needed, prefer an even step count (v7x megacore)."""

    def footprint(tc):
        # BlockSpec double-buffers every input / output block (x2).
        in_b = 2 * _padded_block_bytes((H, W, tc), itemsize)
        out_b = 2 * (_padded_block_bytes((2, Ho, Wo, tc), itemsize)
                     + 2 * _padded_block_bytes((Ho, Wo, tc), itemsize))
        # f32 intermediates live during compute: upcast x, y1, y2, acc.
        mid = (_padded_block_bytes((H, W, tc), 4)
               + 2 * _padded_block_bytes((H, Wo, tc), 4)
               + _padded_block_bytes((Ho, Wo, tc), 4))
        return in_b + out_b + mid

    candidates = [CB] + [d for d in range(128, CB, 128) if CB % d == 0]
    feasible = sorted((tc for tc in candidates if footprint(tc) <= budget_bytes),
                      reverse=True)
    if not feasible:
        # TODO(synk): H-tile with a (K-1)-row halo once (H, W) itself overflows VMEM.
        return min(candidates)
    tc = feasible[0]
    nsteps = CB // tc
    if nsteps > 1 and nsteps % 2 == 1:
        even = [t for t in feasible if (CB // t) % 2 == 0 and CB // t <= 2 * nsteps]
        if even:
            tc = even[0]
    return tc


# --------------------------------- wrapper -----------------------------------

def retina_forward(image: jnp.ndarray, *, f_size: int = 7,
                   f_sigma: float = 2.0, f_k: float = 1.6):
    """image: (B, C, H, W). Returns (interest, interest_pos, interest_neg) in NCHW."""
    B, C, H, W = image.shape
    K = f_size
    Ho, Wo = H - K + 1, W - K + 1
    assert Ho > 0 and Wo > 0, "image smaller than the DoG filter"

    taps1 = _gaussian_taps_1d(K, f_sigma)          # baked-in constants
    taps2 = _gaussian_taps_1d(K, f_k * f_sigma)

    # Channels-last folded layout (lane axis = C*B, batch minor in the fold so
    # the pos/neg concat stays a contiguous lane-concat):
    #   (B, C, H, W) -> (H, W, C, B) -> (H, W, C*B)
    CB = C * B
    xt = jnp.transpose(image, (2, 3, 1, 0)).reshape(H, W, CB)

    vmem_cap = _vmem_capacity_bytes()
    vmem_limit = int(0.75 * vmem_cap)              # ~48 MiB on v7x, ~96 MiB on v5e/v6e
    tile_budget = int(0.70 * vmem_limit)           # headroom for compiler scratch
    tc = _choose_lane_block(CB, H, W, Ho, Wo, image.dtype.itemsize, tile_budget)
    grid = (CB // tc,)

    kernel = partial(_retina_kernel, taps1=taps1, taps2=taps2, ksize=K)

    interest_t, pos_t, neg_t = pl.pallas_call(
        kernel,
        out_shape=(
            jax.ShapeDtypeStruct((2, Ho, Wo, CB), image.dtype),
            jax.ShapeDtypeStruct((Ho, Wo, CB), image.dtype),
            jax.ShapeDtypeStruct((Ho, Wo, CB), image.dtype),
        ),
        grid=grid,
        in_specs=[pl.BlockSpec((H, W, tc), lambda g: (0, 0, g))],
        out_specs=[
            pl.BlockSpec((2, Ho, Wo, tc), lambda g: (0, 0, 0, g)),
            pl.BlockSpec((Ho, Wo, tc), lambda g: (0, 0, g)),
            pl.BlockSpec((Ho, Wo, tc), lambda g: (0, 0, g)),
        ],
        compiler_params=pltpu.CompilerParams(
            dimension_semantics=("parallel",),
            vmem_limit_bytes=vmem_limit,
        ),
    )(xt)

    # Unfold back to the PyTorch NCHW contract (layout plumbing only).
    pos = jnp.transpose(pos_t.reshape(Ho, Wo, C, B), (3, 2, 0, 1))
    neg = jnp.transpose(neg_t.reshape(Ho, Wo, C, B), (3, 2, 0, 1))
    interest = jnp.transpose(
        interest_t.reshape(2, Ho, Wo, C, B), (4, 0, 3, 1, 2)
    ).reshape(B, 2 * C, Ho, Wo)
    return interest, pos, neg


# ------------------------------ reference check ------------------------------

def _reference_forward(image, dog_taps_2d):
    B, C, H, W = image.shape
    K = dog_taps_2d.shape[-1]
    w = jnp.broadcast_to(dog_taps_2d[None, None], (C, 1, K, K))  # OIHW depthwise
    y = jax.lax.conv_general_dilated(
        image, w, window_strides=(1, 1), padding="VALID",
        dimension_numbers=("NCHW", "OIHW", "NCHW"),
        feature_group_count=C, precision=jax.lax.Precision.HIGHEST)
    pos = jnp.maximum(y, 0.0)
    neg = jnp.maximum(-y, 0.0)
    return jnp.concatenate([pos, neg], axis=1), pos, neg


# ----------------------------------- main ------------------------------------

if __name__ == "__main__":
    cfg = {"f_size": 7, "f_sigma": 2.0, "f_k": 1.6}  # Retina default config
    B, C, H, W = 2, 4, 16, 16

    key = jax.random.PRNGKey(0)
    image = jax.random.uniform(key, (B, C, H, W), dtype=jnp.float32)

    interest, pos, neg = retina_forward(
        image, f_size=cfg["f_size"], f_sigma=cfg["f_sigma"], f_k=cfg["f_k"])
    jax.block_until_ready((interest, pos, neg))

    # Validate against a pure-JAX depthwise-conv reference.
    dog2d = make_dog_kernel_2d(cfg["f_size"], cfg["f_sigma"], cfg["f_k"])
    ref_interest, ref_pos, ref_neg = _reference_forward(image, dog2d)
    Ho = H - cfg["f_size"] + 1
    Wo = W - cfg["f_size"] + 1
    assert interest.shape == (B, 2 * C, Ho, Wo)
    assert pos.shape == (B, C, Ho, Wo) and neg.shape == (B, C, Ho, Wo)
    assert jnp.allclose(pos, ref_pos, atol=1e-4), "pos mismatch"
    assert jnp.allclose(neg, ref_neg, atol=1e-4), "neg mismatch"
    assert jnp.allclose(interest, ref_interest, atol=1e-4), "interest mismatch"

    print("KERNEL_OK")
</pallas_src>

<mosaic_0001>
module attributes {stable_mosaic.version = 11 : i64} {
  func.func @_retina_kernel(%arg0: i32, %arg1: memref<16x16x8xf32, #tpu.memory_space<vmem>>, %arg2: memref<2x10x10x8xf32, #tpu.memory_space<vmem>>, %arg3: memref<10x10x8xf32, #tpu.memory_space<vmem>>, %arg4: memref<10x10x8xf32, #tpu.memory_space<vmem>>) attributes {dimension_semantics = [#tpu.dimension_semantics<parallel>], iteration_bounds = array<i64: 1>, scalar_prefetch = 0 : i64, scratch_operands = 0 : i64, tpu.core_type = #tpu.core_type<tc>, window_params = [{transform_indices = @transform_0, window_bounds = array<i64: 16, 16, 8>}, {transform_indices = @transform_1, window_bounds = array<i64: 2, 10, 10, 8>}, {transform_indices = @transform_2, window_bounds = array<i64: 10, 10, 8>}, {transform_indices = @transform_3, window_bounds = array<i64: 10, 10, 8>}]} {
    %c0 = arith.constant 0 : index
    %c0_0 = arith.constant 0 : index
    %c0_1 = arith.constant 0 : index
    %0 = vector.load %arg1[%c0, %c0_0, %c0_1] : memref<16x16x8xf32, #tpu.memory_space<vmem>>, vector<16x16x8xf32>
    %cst = arith.constant 0.000000e+00 : f32
    %1 = vector.broadcast %cst : f32 to vector<16x10x8xf32>
    %cst_2 = arith.constant 0.000000e+00 : f32
    %2 = vector.broadcast %cst_2 : f32 to vector<16x10x8xf32>
    %3 = vector.extract_strided_slice %0 {offsets = [0, 0, 0], sizes = [16, 10, 8], strides = [1, 1, 1]} : vector<16x16x8xf32> to vector<16x10x8xf32>
    %4 = vector.extract_strided_slice %0 {offsets = [0, 6, 0], sizes = [16, 10, 8], strides = [1, 1, 1]} : vector<16x16x8xf32> to vector<16x10x8xf32>
    %5 = arith.addf %3, %4 : vector<16x10x8xf32>
    %cst_3 = arith.constant 0.0701593235 : f32
    %6 = vector.broadcast %cst_3 : f32 to vector<16x10x8xf32>
    %7 = arith.mulf %5, %6 : vector<16x10x8xf32>
    %8 = arith.addf %1, %7 : vector<16x10x8xf32>
    %cst_4 = arith.constant 0.110366575 : f32
    %9 = vector.broadcast %cst_4 : f32 to vector<16x10x8xf32>
    %10 = arith.mulf %5, %9 : vector<16x10x8xf32>
    %11 = arith.addf %2, %10 : vector<16x10x8xf32>
    %12 = vector.extract_strided_slice %0 {offsets = [0, 1, 0], sizes = [16, 10, 8], strides = [1, 1, 1]} : vector<16x16x8xf32> to vector<16x10x8xf32>
    %13 = vector.extract_strided_slice %0 {offsets = [0, 5, 0], sizes = [16, 10, 8], strides = [1, 1, 1]} : vector<16x16x8xf32> to vector<16x10x8xf32>
    %14 = arith.addf %12, %13 : vector<16x10x8xf32>
    %cst_5 = arith.constant 0.131074876 : f32
    %15 = vector.broadcast %cst_5 : f32 to vector<16x10x8xf32>
    %16 = arith.mulf %14, %15 : vector<16x10x8xf32>
    %17 = arith.addf %8, %16 : vector<16x10x8xf32>
    %cst_6 = arith.constant 0.140885562 : f32
    %18 = vector.broadcast %cst_6 : f32 to vector<16x10x8xf32>
    %19 = arith.mulf %14, %18 : vector<16x10x8xf32>
    %20 = arith.addf %11, %19 : vector<16x10x8xf32>
    %21 = vector.extract_strided_slice %0 {offsets = [0, 2, 0], sizes = [16, 10, 8], strides = [1, 1, 1]} : vector<16x16x8xf32> to vector<16x10x8xf32>
    %22 = vector.extract_strided_slice %0 {offsets = [0, 4, 0], sizes = [16, 10, 8], strides = [1, 1, 1]} : vector<16x16x8xf32> to vector<16x10x8xf32>
    %23 = arith.addf %21, %22 : vector<16x10x8xf32>
    %cst_7 = arith.constant 0.190712824 : f32
    %24 = vector.broadcast %cst_7 : f32 to vector<16x10x8xf32>
    %25 = arith.mulf %23, %24 : vector<16x10x8xf32>
    %26 = arith.addf %17, %25 : vector<16x10x8xf32>
    %cst_8 = arith.constant 0.163111225 : f32
    %27 = vector.broadcast %cst_8 : f32 to vector<16x10x8xf32>
    %28 = arith.mulf %23, %27 : vector<16x10x8xf32>
    %29 = arith.addf %20, %28 : vector<16x10x8xf32>
    %30 = vector.extract_strided_slice %0 {offsets = [0, 3, 0], sizes = [16, 10, 8], strides = [1, 1, 1]} : vector<16x16x8xf32> to vector<16x10x8xf32>
    %cst_9 = arith.constant 0.216105938 : f32
    %31 = vector.broadcast %cst_9 : f32 to vector<16x10x8xf32>
    %32 = arith.mulf %30, %31 : vector<16x10x8xf32>
    %33 = arith.addf %26, %32 : vector<16x10x8xf32>
    %cst_10 = arith.constant 0.171273291 : f32
    %34 = vector.broadcast %cst_10 : f32 to vector<16x10x8xf32>
    %35 = arith.mulf %30, %34 : vector<16x10x8xf32>
    %36 = arith.addf %29, %35 : vector<16x10x8xf32>
    %cst_11 = arith.constant 0.000000e+00 : f32
    %37 = vector.broadcast %cst_11 : f32 to vector<10x10x8xf32>
    %38 = vector.extract_strided_slice %33 {offsets = [0, 0, 0], sizes = [10, 10, 8], strides = [1, 1, 1]} : vector<16x10x8xf32> to vector<10x10x8xf32>
    %39 = vector.extract_strided_slice %33 {offsets = [6, 0, 0], sizes = [10, 10, 8], strides = [1, 1, 1]} : vector<16x10x8xf32> to vector<10x10x8xf32>
    %40 = arith.addf %38, %39 : vector<10x10x8xf32>
    %41 = vector.extract_strided_slice %36 {offsets = [0, 0, 0], sizes = [10, 10, 8], strides = [1, 1, 1]} : vector<16x10x8xf32> to vector<10x10x8xf32>
    %42 = vector.extract_strided_slice %36 {offsets = [6, 0, 0], sizes = [10, 10, 8], strides = [1, 1, 1]} : vector<16x10x8xf32> to vector<10x10x8xf32>
    %43 = arith.addf %41, %42 : vector<10x10x8xf32>
    %cst_12 = arith.constant 0.0701593235 : f32
    %44 = vector.broadcast %cst_12 : f32 to vector<10x10x8xf32>
    %45 = arith.mulf %40, %44 : vector<10x10x8xf32>
    %cst_13 = arith.constant 0.110366575 : f32
    %46 = vector.broadcast %cst_13 : f32 to vector<10x10x8xf32>
    %47 = arith.mulf %43, %46 : vector<10x10x8xf32>
    %48 = arith.subf %45, %47 : vector<10x10x8xf32>
    %49 = arith.addf %37, %48 : vector<10x10x8xf32>
    %50 = vector.extract_strided_slice %33 {offsets = [1, 0, 0], sizes = [10, 10, 8], strides = [1, 1, 1]} : vector<16x10x8xf32> to vector<10x10x8xf32>
    %51 = vector.extract_strided_slice %33 {offsets = [5, 0, 0], sizes = [10, 10, 8], strides = [1, 1, 1]} : vector<16x10x8xf32> to vector<10x10x8xf32>
    %52 = arith.addf %50, %51 : vector<10x10x8xf32>
    %53 = vector.extract_strided_slice %36 {offsets = [1, 0, 0], sizes = [10, 10, 8], strides = [1, 1, 1]} : vector<16x10x8xf32> to vector<10x10x8xf32>
    %54 = vector.extract_strided_slice %36 {offsets = [5, 0, 0], sizes = [10, 10, 8], strides = [1, 1, 1]} : vector<16x10x8xf32> to vector<10x10x8xf32>
    %55 = arith.addf %53, %54 : vector<10x10x8xf32>
    %cst_14 = arith.constant 0.131074876 : f32
    %56 = vector.broadcast %cst_14 : f32 to vector<10x10x8xf32>
    %57 = arith.mulf %52, %56 : vector<10x10x8xf32>
    %cst_15 = arith.constant 0.140885562 : f32
    %58 = vector.broadcast %cst_15 : f32 to vector<10x10x8xf32>
    %59 = arith.mulf %55, %58 : vector<10x10x8xf32>
    %60 = arith.subf %57, %59 : vector<10x10x8xf32>
    %61 = arith.addf %49, %60 : vector<10x10x8xf32>
    %62 = vector.extract_strided_slice %33 {offsets = [2, 0, 0], sizes = [10, 10, 8], strides = [1, 1, 1]} : vector<16x10x8xf32> to vector<10x10x8xf32>
    %63 = vector.extract_strided_slice %33 {offsets = [4, 0, 0], sizes = [10, 10, 8], strides = [1, 1, 1]} : vector<16x10x8xf32> to vector<10x10x8xf32>
    %64 = arith.addf %62, %63 : vector<10x10x8xf32>
    %65 = vector.extract_strided_slice %36 {offsets = [2, 0, 0], sizes = [10, 10, 8], strides = [1, 1, 1]} : vector<16x10x8xf32> to vector<10x10x8xf32>
    %66 = vector.extract_strided_slice %36 {offsets = [4, 0, 0], sizes = [10, 10, 8], strides = [1, 1, 1]} : vector<16x10x8xf32> to vector<10x10x8xf32>
    %67 = arith.addf %65, %66 : vector<10x10x8xf32>
    %cst_16 = arith.constant 0.190712824 : f32
    %68 = vector.broadcast %cst_16 : f32 to vector<10x10x8xf32>
    %69 = arith.mulf %64, %68 : vector<10x10x8xf32>
    %cst_17 = arith.constant 0.163111225 : f32
    %70 = vector.broadcast %cst_17 : f32 to vector<10x10x8xf32>
    %71 = arith.mulf %67, %70 : vector<10x10x8xf32>
    %72 = arith.subf %69, %71 : vector<10x10x8xf32>
    %73 = arith.addf %61, %72 : vector<10x10x8xf32>
    %74 = vector.extract_strided_slice %33 {offsets = [3, 0, 0], sizes = [10, 10, 8], strides = [1, 1, 1]} : vector<16x10x8xf32> to vector<10x10x8xf32>
    %cst_18 = arith.constant 0.216105938 : f32
    %75 = vector.broadcast %cst_18 : f32 to vector<10x10x8xf32>
    %76 = arith.mulf %74, %75 : vector<10x10x8xf32>
    %77 = vector.extract_strided_slice %36 {offsets = [3, 0, 0], sizes = [10, 10, 8], strides = [1, 1, 1]} : vector<16x10x8xf32> to vector<10x10x8xf32>
    %cst_19 = arith.constant 0.171273291 : f32
    %78 = vector.broadcast %cst_19 : f32 to vector<10x10x8xf32>
    %79 = arith.mulf %77, %78 : vector<10x10x8xf32>
    %80 = arith.subf %76, %79 : vector<10x10x8xf32>
    %81 = arith.addf %73, %80 : vector<10x10x8xf32>
    %cst_20 = arith.constant 0.000000e+00 : f32
    %82 = vector.broadcast %cst_20 : f32 to vector<10x10x8xf32>
    %83 = arith.maximumf %81, %82 : vector<10x10x8xf32>
    %cst_21 = arith.constant 0.000000e+00 : f32
    %84 = vector.broadcast %cst_21 : f32 to vector<10x10x8xf32>
    %85 = arith.subf %84, %81 : vector<10x10x8xf32>
    %cst_22 = arith.constant 0.000000e+00 : f32
    %86 = vector.broadcast %cst_22 : f32 to vector<10x10x8xf32>
    %87 = arith.maximumf %85, %86 : vector<10x10x8xf32>
    %c0_23 = arith.constant 0 : index
    %c0_24 = arith.constant 0 : index
    %c0_25 = arith.constant 0 : index
    %88 = vector.load %arg3[%c0_23, %c0_24, %c0_25] : memref<10x10x8xf32, #tpu.memory_space<vmem>>, vector<10x10x8xf32>
    tpu.vector_store %arg3[%c0_23, %c0_24, %c0_25], %83 {strides = array<i32>} : memref<10x10x8xf32, #tpu.memory_space<vmem>>, vector<10x10x8xf32>,
    %c0_26 = arith.constant 0 : index
    %c0_27 = arith.constant 0 : index
    %c0_28 = arith.constant 0 : index
    %89 = vector.load %arg4[%c0_26, %c0_27, %c0_28] : memref<10x10x8xf32, #tpu.memory_space<vmem>>, vector<10x10x8xf32>
    tpu.vector_store %arg4[%c0_26, %c0_27, %c0_28], %87 {strides = array<i32>} : memref<10x10x8xf32, #tpu.memory_space<vmem>>, vector<10x10x8xf32>,
    %c0_29 = arith.constant 0 : index
    %c0_30 = arith.constant 0 : index
    %c0_31 = arith.constant 0 : index
    %c0_32 = arith.constant 0 : index
    %90 = vector.load %arg2[%c0_29, %c0_30, %c0_31, %c0_32] : memref<2x10x10x8xf32, #tpu.memory_space<vmem>>, vector<1x10x10x8xf32>
    %91 = vector.shape_cast %90 : vector<1x10x10x8xf32> to vector<10x10x8xf32>
    %92 = vector.shape_cast %83 : vector<10x10x8xf32> to vector<1x10x10x8xf32>
    tpu.vector_store %arg2[%c0_29, %c0_30, %c0_31, %c0_32], %92 {strides = array<i32>} : memref<2x10x10x8xf32, #tpu.memory_space<vmem>>, vector<1x10x10x8xf32>,
    %c1 = arith.constant 1 : index
    %c0_33 = arith.constant 0 : index
    %c0_34 = arith.constant 0 : index
    %c0_35 = arith.constant 0 : index
    %93 = vector.load %arg2[%c1, %c0_33, %c0_34, %c0_35] : memref<2x10x10x8xf32, #tpu.memory_space<vmem>>, vector<1x10x10x8xf32>
    %94 = vector.shape_cast %93 : vector<1x10x10x8xf32> to vector<10x10x8xf32>
    %95 = vector.shape_cast %87 : vector<10x10x8xf32> to vector<1x10x10x8xf32>
    tpu.vector_store %arg2[%c1, %c0_33, %c0_34, %c0_35], %95 {strides = array<i32>} : memref<2x10x10x8xf32, #tpu.memory_space<vmem>>, vector<1x10x10x8xf32>,
    return
  }
  func.func @transform_0(%arg0: i32) -> (i32, i32, i32) {
    %c0_i32 = arith.constant 0 : i32
    %c0_i32_0 = arith.constant 0 : i32
    %c0_i32_1 = arith.constant 0 : i32
    return %c0_i32, %c0_i32_0, %arg0 : i32, i32, i32
  }
  func.func @transform_1(%arg0: i32) -> (i32, i32, i32, i32) {
    %c0_i32 = arith.constant 0 : i32
    %c0_i32_0 = arith.constant 0 : i32
    %c0_i32_1 = arith.constant 0 : i32
    %c0_i32_2 = arith.constant 0 : i32
    return %c0_i32, %c0_i32_0, %c0_i32_1, %arg0 : i32, i32, i32, i32
  }
  func.func @transform_2(%arg0: i32) -> (i32, i32, i32) {
    %c0_i32 = arith.constant 0 : i32
    %c0_i32_0 = arith.constant 0 : i32
    %c0_i32_1 = arith.constant 0 : i32
    return %c0_i32, %c0_i32_0, %arg0 : i32, i32, i32
  }
  func.func @transform_3(%arg0: i32) -> (i32, i32, i32) {
    %c0_i32 = arith.constant 0 : i32
    %c0_i32_0 = arith.constant 0 : i32
    %c0_i32_1 = arith.constant 0 : i32
    return %c0_i32, %c0_i32_0, %arg0 : i32, i32, i32
  }
}

</mosaic_0001>

<llo_original>
// kernel: tpu_custom_call.1
$region0: #{tpu_custom_call.1}
  #allocation0 [shape = 'u32[]', space=smem, size = 0x4, offset = 0x4, fixed_abs, tag = 'smem constant byte address 0x4 - core index']
  #allocation1 [shape = 'u32[144,128]{1,0:T(1,128)}', space=vmem, size = 0x12000, scoped, tag = 'internal scratch']
  %s0 = inlined_call_operand.vmem [shape: f32[16,16,8], index: 0, kind: input, shape index: {}]
  %s1 = inlined_call_operand.vmem [shape: f32[2,10,10,8], index: 1, kind: output, shape index: {0}]
  %s2 = inlined_call_operand.vmem [shape: f32[10,10,8], index: 2, kind: output, shape index: {1}]
  %s3 = inlined_call_operand.vmem [shape: f32[10,10,8], index: 3, kind: output, shape index: {2}]
  %4 = xla_tuple %s1, %s2, %s3
  %s5 = sld [smem:[#allocation0]]
  $region30: #{tpu_custom_call.1} parent=0
    _
  %s7 = ssub.s32 1, %s5
  %s8 = scalar_select 0, %s7, %s5
  // Predicated region
  $region2: #{tpu_custom_call.1} parent=0 // pred_check
    _
  $region3: #{tpu_custom_call.1} parent=0 // pred_check_branch
    %10 = sbr.rel (0) target = $region5
  $region4: #{tpu_custom_call.1} parent=0 // pred_region
    _
  $region5: #{tpu_custom_call.1} parent=0 // pred_fallthru
    _
  %v11 = vld [vmem:[%s0] sm:$0xff]
  %v12 = vld [vmem:[%s0 + $0x8] sm:$0xff]
  %v13 = vld [vmem:[%s0 + $0x10] sm:$0xff]
  %v14 = vld [vmem:[%s0 + $0x18] sm:$0xff]
  %v15 = vld [vmem:[%s0 + $0x20] sm:$0xff]
  %v16 = vld [vmem:[%s0 + $0x28] sm:$0xff]
  %v17 = vld [vmem:[%s0 + $0x30] sm:$0xff]
  %v18 = vld [vmem:[%s0 + $0x38] sm:$0xff]
  %v19 = vld [vmem:[%s0 + $0x40] sm:$0xff]
  %v20 = vld [vmem:[%s0 + $0x48] sm:$0xff]
  %v21 = vld [vmem:[%s0 + $0x50] sm:$0xff]
  %v22 = vld [vmem:[%s0 + $0x58] sm:$0xff]
  %v23 = vld [vmem:[%s0 + $0x60] sm:$0xff]
  %v24 = vld [vmem:[%s0 + $0x68] sm:$0xff]
  %v25 = vld [vmem:[%s0 + $0x70] sm:$0xff]
  %v26 = vld [vmem:[%s0 + $0x78] sm:$0xff]
  %v27 = vld [vmem:[%s0 + $0x80] sm:$0xff]
  %v28 = vld [vmem:[%s0 + $0x88] sm:$0xff]
  %v29 = vld [vmem:[%s0 + $0x90] sm:$0xff]
  %v30 = vld [vmem:[%s0 + $0x98] sm:$0xff]
  %v31 = vld [vmem:[%s0 + $0xa0] sm:$0xff]
  %v32 = vld [vmem:[%s0 + $0xa8] sm:$0xff]
  %v33 = vld [vmem:[%s0 + $0xb0] sm:$0xff]
  %v34 = vld [vmem:[%s0 + $0xb8] sm:$0xff]
  %v35 = vld [vmem:[%s0 + $0xc0] sm:$0xff]
  %v36 = vld [vmem:[%s0 + $0xc8] sm:$0xff]
  %v37 = vld [vmem:[%s0 + $0xd0] sm:$0xff]
  %v38 = vld [vmem:[%s0 + $0xd8] sm:$0xff]
  %v39 = vld [vmem:[%s0 + $0xe0] sm:$0xff]
  %v40 = vld [vmem:[%s0 + $0xe8] sm:$0xff]
  %v41 = vld [vmem:[%s0 + $0xf0] sm:$0xff]
  %v42 = vld [vmem:[%s0 + $0xf8] sm:$0xff]
  %vm75 = vcmask 1041408
  %v76 = vrot.slane %v11, 6
  %v77 = vrot.slane %v12, 6
  %v78 = vsel %vm75, %v76, %v77
  %v79 = vrot.slane %v13, 6
  %v80 = vrot.slane %v14, 6
  %v81 = vsel %vm75, %v79, %v80
  %v82 = vrot.slane %v15, 6
  %v83 = vrot.slane %v16, 6
  %v84 = vsel %vm75, %v82, %v83
  %v85 = vrot.slane %v17, 6
  %v86 = vrot.slane %v18, 6
  %v87 = vsel %vm75, %v85, %v86
  %v88 = vrot.slane %v19, 6
  %v89 = vrot.slane %v20, 6
  %v90 = vsel %vm75, %v88, %v89
  %v91 = vrot.slane %v21, 6
  %v92 = vrot.slane %v22, 6
  %v93 = vsel %vm75, %v91, %v92
  %v94 = vrot.slane %v23, 6
  %v95 = vrot.slane %v24, 6
  %v96 = vsel %vm75, %v94, %v95
  %v97 = vrot.slane %v25, 6
  %v98 = vrot.slane %v26, 6
  %v99 = vsel %vm75, %v97, %v98
  %v100 = vrot.slane %v27, 6
  %v101 = vrot.slane %v28, 6
  %v102 = vsel %vm75, %v100, %v101
  %v103 = vrot.slane %v29, 6
  %v104 = vrot.slane %v30, 6
  %v105 = vsel %vm75, %v103, %v104
  %v106 = vrot.slane %v31, 6
  %v107 = vrot.slane %v32, 6
  %v108 = vsel %vm75, %v106, %v107
  %v109 = vrot.slane %v33, 6
  %v110 = vrot.slane %v34, 6
  %v111 = vsel %vm75, %v109, %v110
  %v112 = vrot.slane %v35, 6
  %v113 = vrot.slane %v36, 6
  %v114 = vsel %vm75, %v112, %v113
  %v115 = vrot.slane %v37, 6
  %v116 = vrot.slane %v38, 6
  %v117 = vsel %vm75, %v115, %v116
  %v118 = vrot.slane %v39, 6
  %v119 = vrot.slane %v40, 6
  %v120 = vsel %vm75, %v118, %v119
  %v121 = vrot.slane %v41, 6
  %v122 = vrot.slane %v42, 6
  %v123 = vsel %vm75, %v121, %v122
  %v156 = vadd.f32 %v11, %v78
  %v157 = vadd.f32 %v12, %v77
  %v158 = vadd.f32 %v13, %v81
  %v159 = vadd.f32 %v14, %v80
  %v160 = vadd.f32 %v15, %v84
  %v161 = vadd.f32 %v16, %v83
  %v162 = vadd.f32 %v17, %v87
  %v163 = vadd.f32 %v18, %v86
  %v164 = vadd.f32 %v19, %v90
  %v165 = vadd.f32 %v20, %v89
  %v166 = vadd.f32 %v21, %v93
  %v167 = vadd.f32 %v22, %v92
  %v168 = vadd.f32 %v23, %v96
  %v169 = vadd.f32 %v24, %v95
  %v170 = vadd.f32 %v25, %v99
  %v171 = vadd.f32 %v26, %v98
  %v172 = vadd.f32 %v27, %v102
  %v173 = vadd.f32 %v28, %v101
  %v174 = vadd.f32 %v29, %v105
  %v175 = vadd.f32 %v30, %v104
  %v176 = vadd.f32 %v31, %v108
  %v177 = vadd.f32 %v32, %v107
  %v178 = vadd.f32 %v33, %v111
  %v179 = vadd.f32 %v34, %v110
  %v180 = vadd.f32 %v35, %v114
  %v181 = vadd.f32 %v36, %v113
  %v182 = vadd.f32 %v37, %v117
  %v183 = vadd.f32 %v38, %v116
  %v184 = vadd.f32 %v39, %v120
  %v185 = vadd.f32 %v40, %v119
  %v186 = vadd.f32 %v41, %v123
  %v187 = vadd.f32 %v42, %v122
  %v188 = vmul.f32 %v156, 0.07015932
  %v189 = vmul.f32 %v157, 0.07015932
  %v190 = vmul.f32 %v158, 0.07015932
  %v191 = vmul.f32 %v159, 0.07015932
  %v192 = vmul.f32 %v160, 0.07015932
  %v193 = vmul.f32 %v161, 0.07015932
  %v194 = vmul.f32 %v162, 0.07015932
  %v195 = vmul.f32 %v163, 0.07015932
  %v196 = vmul.f32 %v164, 0.07015932
  %v197 = vmul.f32 %v165, 0.07015932
  %v198 = vmul.f32 %v166, 0.07015932
  %v199 = vmul.f32 %v167, 0.07015932
  %v200 = vmul.f32 %v168, 0.07015932
  %v201 = vmul.f32 %v169, 0.07015932
  %v202 = vmul.f32 %v170, 0.07015932
  %v203 = vmul.f32 %v171, 0.07015932
  %v204 = vmul.f32 %v172, 0.07015932
  %v205 = vmul.f32 %v173, 0.07015932
  %v206 = vmul.f32 %v174, 0.07015932
  %v207 = vmul.f32 %v175, 0.07015932
  %v208 = vmul.f32 %v176, 0.07015932
  %v209 = vmul.f32 %v177, 0.07015932
  %v210 = vmul.f32 %v178, 0.07015932
  %v211 = vmul.f32 %v179, 0.07015932
  %v212 = vmul.f32 %v180, 0.07015932
  %v213 = vmul.f32 %v181, 0.07015932
  %v214 = vmul.f32 %v182, 0.07015932
  %v215 = vmul.f32 %v183, 0.07015932
  %v216 = vmul.f32 %v184, 0.07015932
  %v217 = vmul.f32 %v185, 0.07015932
  %v218 = vmul.f32 %v186, 0.07015932
  %v219 = vmul.f32 %v187, 0.07015932
  %v220 = vadd.f32 %v188, 0.0
  %v221 = vadd.f32 %v189, 0.0
  %v222 = vadd.f32 %v190, 0.0
  %v223 = vadd.f32 %v191, 0.0
  %v224 = vadd.f32 %v192, 0.0
  %v225 = vadd.f32 %v193, 0.0
  %v226 = vadd.f32 %v194, 0.0
  %v227 = vadd.f32 %v195, 0.0
  %v228 = vadd.f32 %v196, 0.0
  %v229 = vadd.f32 %v197, 0.0
  %v230 = vadd.f32 %v198, 0.0
  %v231 = vadd.f32 %v199, 0.0
  %v232 = vadd.f32 %v200, 0.0
  %v233 = vadd.f32 %v201, 0.0
  %v234 = vadd.f32 %v202, 0.0
  %v235 = vadd.f32 %v203, 0.0
  %v236 = vadd.f32 %v204, 0.0
  %v237 = vadd.f32 %v205, 0.0
  %v238 = vadd.f32 %v206, 0.0
  %v239 = vadd.f32 %v207, 0.0
  %v240 = vadd.f32 %v208, 0.0
  %v241 = vadd.f32 %v209, 0.0
  %v242 = vadd.f32 %v210, 0.0
  %v243 = vadd.f32 %v211, 0.0
  %v244 = vadd.f32 %v212, 0.0
  %v245 = vadd.f32 %v213, 0.0
  %v246 = vadd.f32 %v214, 0.0
  %v247 = vadd.f32 %v215, 0.0
  %v248 = vadd.f32 %v216, 0.0
  %v249 = vadd.f32 %v217, 0.0
  %v250 = vadd.f32 %v218, 0.0
  %v251 = vadd.f32 %v219, 0.0
  %v252 = vmul.f32 %v156, 0.110366575
  %v253 = vmul.f32 %v157, 0.110366575
  %v254 = vmul.f32 %v158, 0.110366575
  %v255 = vmul.f32 %v159, 0.110366575
  %v256 = vmul.f32 %v160, 0.110366575
  %v257 = vmul.f32 %v161, 0.110366575
  %v258 = vmul.f32 %v162, 0.110366575
  %v259 = vmul.f32 %v163, 0.110366575
  %v260 = vmul.f32 %v164, 0.110366575
  %v261 = vmul.f32 %v165, 0.110366575
  %v262 = vmul.f32 %v166, 0.110366575
  %v263 = vmul.f32 %v167, 0.110366575
  %v264 = vmul.f32 %v168, 0.110366575
  %v265 = vmul.f32 %v169, 0.110366575
  %v266 = vmul.f32 %v170, 0.110366575
  %v267 = vmul.f32 %v171, 0.110366575
  %v268 = vmul.f32 %v172, 0.110366575
  %v269 = vmul.f32 %v173, 0.110366575
  %v270 = vmul.f32 %v174, 0.110366575
  %v271 = vmul.f32 %v175, 0.110366575
  %v272 = vmul.f32 %v176, 0.110366575
  %v273 = vmul.f32 %v177, 0.110366575
  %v274 = vmul.f32 %v178, 0.110366575
  %v275 = vmul.f32 %v179, 0.110366575
  %v276 = vmul.f32 %v180, 0.110366575
  %v277 = vmul.f32 %v181, 0.110366575
  %v278 = vmul.f32 %v182, 0.110366575
  %v279 = vmul.f32 %v183, 0.110366575
  %v280 = vmul.f32 %v184, 0.110366575
  %v281 = vmul.f32 %v185, 0.110366575
  %v282 = vmul.f32 %v186, 0.110366575
  %v283 = vmul.f32 %v187, 0.110366575
  %v284 = vadd.f32 %v252, 0.0
  %v285 = vadd.f32 %v253, 0.0
  %v286 = vadd.f32 %v254, 0.0
  %v287 = vadd.f32 %v255, 0.0
  %v288 = vadd.f32 %v256, 0.0
  %v289 = vadd.f32 %v257, 0.0
  %v290 = vadd.f32 %v258, 0.0
  %v291 = vadd.f32 %v259, 0.0
  %v292 = vadd.f32 %v260, 0.0
  %v293 = vadd.f32 %v261, 0.0
  %v294 = vadd.f32 %v262, 0.0
  %v295 = vadd.f32 %v263, 0.0
  %v296 = vadd.f32 %v264, 0.0
  %v297 = vadd.f32 %v265, 0.0
  %v298 = vadd.f32 %v266, 0.0
  %v299 = vadd.f32 %v267, 0.0
  %v300 = vadd.f32 %v268, 0.0
  %v301 = vadd.f32 %v269, 0.0
  %v302 = vadd.f32 %v270, 0.0
  %v303 = vadd.f32 %v271, 0.0
  %v304 = vadd.f32 %v272, 0.0
  %v305 = vadd.f32 %v273, 0.0
  %v306 = vadd.f32 %v274, 0.0
  %v307 = vadd.f32 %v275, 0.0
  %v308 = vadd.f32 %v276, 0.0
  %v309 = vadd.f32 %v277, 0.0
  %v310 = vadd.f32 %v278, 0.0
  %v311 = vadd.f32 %v279, 0.0
  %v312 = vadd.f32 %v280, 0.0
  %v313 = vadd.f32 %v281, 0.0
  %v314 = vadd.f32 %v282, 0.0
  %v315 = vadd.f32 %v283, 0.0
  %vm316 = vcmask 1043456
  %v317 = vrot.slane %v11, 4
  %v318 = vrot.slane %v12, 4
  %v319 = vsel %vm316, %v317, %v318
  %v320 = vrot.slane %v13, 4
  %v321 = vrot.slane %v14, 4
  %v322 = vsel %vm316, %v320, %v321
  %v323 = vrot.slane %v15, 4
  %v324 = vrot.slane %v16, 4
  %v325 = vsel %vm316, %v323, %v324
  %v326 = vrot.slane %v17, 4
  %v327 = vrot.slane %v18, 4
  %v328 = vsel %vm316, %v326, %v327
  %v329 = vrot.slane %v19, 4
  %v330 = vrot.slane %v20, 4
  %v331 = vsel %vm316, %v329, %v330
  %v332 = vrot.slane %v21, 4
  %v333 = vrot.slane %v22, 4
  %v334 = vsel %vm316, %v332, %v333
  %v335 = vrot.slane %v23, 4
  %v336 = vrot.slane %v24, 4
  %v337 = vsel %vm316, %v335, %v336
  %v338 = vrot.slane %v25, 4
  %v339 = vrot.slane %v26, 4
  %v340 = vsel %vm316, %v338, %v339
  %v341 = vrot.slane %v27, 4
  %v342 = vrot.slane %v28, 4
  %v343 = vsel %vm316, %v341, %v342
  %v344 = vrot.slane %v29, 4
  %v345 = vrot.slane %v30, 4
  %v346 = vsel %vm316, %v344, %v345
  %v347 = vrot.slane %v31, 4
  %v348 = vrot.slane %v32, 4
  %v349 = vsel %vm316, %v347, %v348
  %v350 = vrot.slane %v33, 4
  %v351 = vrot.slane %v34, 4
  %v352 = vsel %vm316, %v350, %v351
  %v353 = vrot.slane %v35, 4
  %v354 = vrot.slane %v36, 4
  %v355 = vsel %vm316, %v353, %v354
  %v356 = vrot.slane %v37, 4
  %v357 = vrot.slane %v38, 4
  %v358 = vsel %vm316, %v356, %v357
  %v359 = vrot.slane %v39, 4
  %v360 = vrot.slane %v40, 4
  %v361 = vsel %vm316, %v359, %v360
  %v362 = vrot.slane %v41, 4
  %v363 = vrot.slane %v42, 4
  %v364 = vsel %vm316, %v362, %v363
  %v397 = vadd.f32 %v11, %v319
  %v398 = vadd.f32 %v12, %v318
  %v399 = vadd.f32 %v13, %v322
  %v400 = vadd.f32 %v14, %v321
  %v401 = vadd.f32 %v15, %v325
  %v402 = vadd.f32 %v16, %v324
  %v403 = vadd.f32 %v17, %v328
  %v404 = vadd.f32 %v18, %v327
  %v405 = vadd.f32 %v19, %v331
  %v406 = vadd.f32 %v20, %v330
  %v407 = vadd.f32 %v21, %v334
  %v408 = vadd.f32 %v22, %v333
  %v409 = vadd.f32 %v23, %v337
  %v410 = vadd.f32 %v24, %v336
  %v411 = vadd.f32 %v25, %v340
  %v412 = vadd.f32 %v26, %v339
  %v413 = vadd.f32 %v27, %v343
  %v414 = vadd.f32 %v28, %v342
  %v415 = vadd.f32 %v29, %v346
  %v416 = vadd.f32 %v30, %v345
  %v417 = vadd.f32 %v31, %v349
  %v418 = vadd.f32 %v32, %v348
  %v419 = vadd.f32 %v33, %v352
  %v420 = vadd.f32 %v34, %v351
  %v421 = vadd.f32 %v35, %v355
  %v422 = vadd.f32 %v36, %v354
  %v423 = vadd.f32 %v37, %v358
  %v424 = vadd.f32 %v38, %v357
  %v425 = vadd.f32 %v39, %v361
  %v426 = vadd.f32 %v40, %v360
  %v427 = vadd.f32 %v41, %v364
  %v428 = vadd.f32 %v42, %v363
  %v429 = vmul.f32 %v397, 0.13107488
  %v430 = vmul.f32 %v398, 0.13107488
  %v431 = vmul.f32 %v399, 0.13107488
  %v432 = vmul.f32 %v400, 0.13107488
  %v433 = vmul.f32 %v401, 0.13107488
  %v434 = vmul.f32 %v402, 0.13107488
  %v435 = vmul.f32 %v403, 0.13107488
  %v436 = vmul.f32 %v404, 0.13107488
  %v437 = vmul.f32 %v405, 0.13107488
  %v438 = vmul.f32 %v406, 0.13107488
  %v439 = vmul.f32 %v407, 0.13107488
  %v440 = vmul.f32 %v408, 0.13107488
  %v441 = vmul.f32 %v409, 0.13107488
  %v442 = vmul.f32 %v410, 0.13107488
  %v443 = vmul.f32 %v411, 0.13107488
  %v444 = vmul.f32 %v412, 0.13107488
  %v445 = vmul.f32 %v413, 0.13107488
  %v446 = vmul.f32 %v414, 0.13107488
  %v447 = vmul.f32 %v415, 0.13107488
  %v448 = vmul.f32 %v416, 0.13107488
  %v449 = vmul.f32 %v417, 0.13107488
  %v450 = vmul.f32 %v418, 0.13107488
  %v451 = vmul.f32 %v419, 0.13107488
  %v452 = vmul.f32 %v420, 0.13107488
  %v453 = vmul.f32 %v421, 0.13107488
  %v454 = vmul.f32 %v422, 0.13107488
  %v455 = vmul.f32 %v423, 0.13107488
  %v456 = vmul.f32 %v424, 0.13107488
  %v457 = vmul.f32 %v425, 0.13107488
  %v458 = vmul.f32 %v426, 0.13107488
  %v459 = vmul.f32 %v427, 0.13107488
  %v460 = vmul.f32 %v428, 0.13107488
  %vm493 = vcmask 1046528
  %v494 = vrot.slane %v429, 1
  %v495 = vrot.slane %v430, 1
  %v496 = vsel %vm493, %v494, %v495
  %v497 = vrot.slane %v431, 1
  %v498 = vrot.slane %v432, 1
  %v499 = vsel %vm493, %v497, %v498
  %v500 = vrot.slane %v433, 1
  %v501 = vrot.slane %v434, 1
  %v502 = vsel %vm493, %v500, %v501
  %v503 = vrot.slane %v435, 1
  %v504 = vrot.slane %v436, 1
  %v505 = vsel %vm493, %v503, %v504
  %v506 = vrot.slane %v437, 1
  %v507 = vrot.slane %v438, 1
  %v508 = vsel %vm493, %v506, %v507
  %v509 = vrot.slane %v439, 1
  %v510 = vrot.slane %v440, 1
  %v511 = vsel %vm493, %v509, %v510
  %v512 = vrot.slane %v441, 1
  %v513 = vrot.slane %v442, 1
  %v514 = vsel %vm493, %v512, %v513
  %v515 = vrot.slane %v443, 1
  %v516 = vrot.slane %v444, 1
  %v517 = vsel %vm493, %v515, %v516
  %v518 = vrot.slane %v445, 1
  %v519 = vrot.slane %v446, 1
  %v520 = vsel %vm493, %v518, %v519
  %v521 = vrot.slane %v447, 1
  %v522 = vrot.slane %v448, 1
  %v523 = vsel %vm493, %v521, %v522
  %v524 = vrot.slane %v449, 1
  %v525 = vrot.slane %v450, 1
  %v526 = vsel %vm493, %v524, %v525
  %v527 = vrot.slane %v451, 1
  %v528 = vrot.slane %v452, 1
  %v529 = vsel %vm493, %v527, %v528
  %v530 = vrot.slane %v453, 1
  %v531 = vrot.slane %v454, 1
  %v532 = vsel %vm493, %v530, %v531
  %v533 = vrot.slane %v455, 1
  %v534 = vrot.slane %v456, 1
  %v535 = vsel %vm493, %v533, %v534
  %v536 = vrot.slane %v457, 1
  %v537 = vrot.slane %v458, 1
  %v538 = vsel %vm493, %v536, %v537
  %v539 = vrot.slane %v459, 1
  %v540 = vrot.slane %v460, 1
  %v541 = vsel %vm493, %v539, %v540
  %v574 = vadd.f32 %v220, %v496
  %v575 = vadd.f32 %v221, %v495
  %v576 = vadd.f32 %v222, %v499
  %v577 = vadd.f32 %v223, %v498
  %v578 = vadd.f32 %v224, %v502
  %v579 = vadd.f32 %v225, %v501
  %v580 = vadd.f32 %v226, %v505
  %v581 = vadd.f32 %v227, %v504
  %v582 = vadd.f32 %v228, %v508
  %v583 = vadd.f32 %v229, %v507
  %v584 = vadd.f32 %v230, %v511
  %v585 = vadd.f32 %v231, %v510
  %v586 = vadd.f32 %v232, %v514
  %v587 = vadd.f32 %v233, %v513
  %v588 = vadd.f32 %v234, %v517
  %v589 = vadd.f32 %v235, %v516
  %v590 = vadd.f32 %v236, %v520
  %v591 = vadd.f32 %v237, %v519
  %v592 = vadd.f32 %v238, %v523
  %v593 = vadd.f32 %v239, %v522
  %v594 = vadd.f32 %v240, %v526
  %v595 = vadd.f32 %v241, %v525
  %v596 = vadd.f32 %v242, %v529
  %v597 = vadd.f32 %v243, %v528
  %v598 = vadd.f32 %v244, %v532
  %v599 = vadd.f32 %v245, %v531
  %v600 = vadd.f32 %v246, %v535
  %v601 = vadd.f32 %v247, %v534
  %v602 = vadd.f32 %v248, %v538
  %v603 = vadd.f32 %v249, %v537
  %v604 = vadd.f32 %v250, %v541
  %v605 = vadd.f32 %v251, %v540
  %v606 = vmul.f32 %v397, 0.14088556
  %v607 = vmul.f32 %v398, 0.14088556
  %v608 = vmul.f32 %v399, 0.14088556
  %v609 = vmul.f32 %v400, 0.14088556
  %v610 = vmul.f32 %v401, 0.14088556
  %v611 = vmul.f32 %v402, 0.14088556
  %v612 = vmul.f32 %v403, 0.14088556
  %v613 = vmul.f32 %v404, 0.14088556
  %v614 = vmul.f32 %v405, 0.14088556
  %v615 = vmul.f32 %v406, 0.14088556
  %v616 = vmul.f32 %v407, 0.14088556
  %v617 = vmul.f32 %v408, 0.14088556
  %v618 = vmul.f32 %v409, 0.14088556
  %v619 = vmul.f32 %v410, 0.14088556
  %v620 = vmul.f32 %v411, 0.14088556
  %v621 = vmul.f32 %v412, 0.14088556
  %v622 = vmul.f32 %v413, 0.14088556
  %v623 = vmul.f32 %v414, 0.14088556
  %v624 = vmul.f32 %v415, 0.14088556
  %v625 = vmul.f32 %v416, 0.14088556
  %v626 = vmul.f32 %v417, 0.14088556
  %v627 = vmul.f32 %v418, 0.14088556
  %v628 = vmul.f32 %v419, 0.14088556
  %v629 = vmul.f32 %v420, 0.14088556
  %v630 = vmul.f32 %v421, 0.14088556
  %v631 = vmul.f32 %v422, 0.14088556
  %v632 = vmul.f32 %v423, 0.14088556
  %v633 = vmul.f32 %v424, 0.14088556
  %v634 = vmul.f32 %v425, 0.14088556
  %v635 = vmul.f32 %v426, 0.14088556
  %v636 = vmul.f32 %v427, 0.14088556
  %v637 = vmul.f32 %v428, 0.14088556
  %v670 = vrot.slane %v606, 1
  %v671 = vrot.slane %v607, 1
  %v672 = vsel %vm493, %v670, %v671
  %v673 = vrot.slane %v608, 1
  %v674 = vrot.slane %v609, 1
  %v675 = vsel %vm493, %v673, %v674
  %v676 = vrot.slane %v610, 1
  %v677 = vrot.slane %v611, 1
  %v678 = vsel %vm493, %v676, %v677
  %v679 = vrot.slane %v612, 1
  %v680 = vrot.slane %v613, 1
  %v681 = vsel %vm493, %v679, %v680
  %v682 = vrot.slane %v614, 1
  %v683 = vrot.slane %v615, 1
  %v684 = vsel %vm493, %v682, %v683
  %v685 = vrot.slane %v616, 1
  %v686 = vrot.slane %v617, 1
  %v687 = vsel %vm493, %v685, %v686
  %v688 = vrot.slane %v618, 1
  %v689 = vrot.slane %v619, 1
  %v690 = vsel %vm493, %v688, %v689
  %v691 = vrot.slane %v620, 1
  %v692 = vrot.slane %v621, 1
  %v693 = vsel %vm493, %v691, %v692
  %v694 = vrot.slane %v622, 1
  %v695 = vrot.slane %v623, 1
  %v696 = vsel %vm493, %v694, %v695
  %v697 = vrot.slane %v624, 1
  %v698 = vrot.slane %v625, 1
  %v699 = vsel %vm493, %v697, %v698
  %v700 = vrot.slane %v626, 1
  %v701 = vrot.slane %v627, 1
  %v702 = vsel %vm493, %v700, %v701
  %v703 = vrot.slane %v628, 1
  %v704 = vrot.slane %v629, 1
  %v705 = vsel %vm493, %v703, %v704
  %v706 = vrot.slane %v630, 1
  %v707 = vrot.slane %v631, 1
  %v708 = vsel %vm493, %v706, %v707
  %v709 = vrot.slane %v632, 1
  %v710 = vrot.slane %v633, 1
  %v711 = vsel %vm493, %v709, %v710
  %v712 = vrot.slane %v634, 1
  %v713 = vrot.slane %v635, 1
  %v714 = vsel %vm493, %v712, %v713
  %v715 = vrot.slane %v636, 1
  %v716 = vrot.slane %v637, 1
  %v717 = vsel %vm493, %v715, %v716
  %v750 = vadd.f32 %v284, %v672
  %v751 = vadd.f32 %v285, %v671
  %v752 = vadd.f32 %v286, %v675
  %v753 = vadd.f32 %v287, %v674
  %v754 = vadd.f32 %v288, %v678
  %v755 = vadd.f32 %v289, %v677
  %v756 = vadd.f32 %v290, %v681
  %v757 = vadd.f32 %v291, %v680
  %v758 = vadd.f32 %v292, %v684
  %v759 = vadd.f32 %v293, %v683
  %v760 = vadd.f32 %v294, %v687
  %v761 = vadd.f32 %v295, %v686
  %v762 = vadd.f32 %v296, %v690
  %v763 = vadd.f32 %v297, %v689
  %v764 = vadd.f32 %v298, %v693
  %v765 = vadd.f32 %v299, %v692
  %v766 = vadd.f32 %v300, %v696
  %v767 = vadd.f32 %v301, %v695
  %v768 = vadd.f32 %v302, %v699
  %v769 = vadd.f32 %v303, %v698
  %v770 = vadd.f32 %v304, %v702
  %v771 = vadd.f32 %v305, %v701
  %v772 = vadd.f32 %v306, %v705
  %v773 = vadd.f32 %v307, %v704
  %v774 = vadd.f32 %v308, %v708
  %v775 = vadd.f32 %v309, %v707
  %v776 = vadd.f32 %v310, %v711
  %v777 = vadd.f32 %v311, %v710
  %v778 = vadd.f32 %v312, %v714
  %v779 = vadd.f32 %v313, %v713
  %v780 = vadd.f32 %v314, %v717
  %v781 = vadd.f32 %v315, %v716
  %vm782 = vcmask 1045504
  %v783 = vrot.slane %v11, 2
  %v784 = vrot.slane %v12, 2
  %v785 = vsel %vm782, %v783, %v784
  %v786 = vrot.slane %v13, 2
  %v787 = vrot.slane %v14, 2
  %v788 = vsel %vm782, %v786, %v787
  %v789 = vrot.slane %v15, 2
  %v790 = vrot.slane %v16, 2
  %v791 = vsel %vm782, %v789, %v790
  %v792 = vrot.slane %v17, 2
  %v793 = vrot.slane %v18, 2
  %v794 = vsel %vm782, %v792, %v793
  %v795 = vrot.slane %v19, 2
  %v796 = vrot.slane %v20, 2
  %v797 = vsel %vm782, %v795, %v796
  %v798 = vrot.slane %v21, 2
  %v799 = vrot.slane %v22, 2
  %v800 = vsel %vm782, %v798, %v799
  %v801 = vrot.slane %v23, 2
  %v802 = vrot.slane %v24, 2
  %v803 = vsel %vm782, %v801, %v802
  %v804 = vrot.slane %v25, 2
  %v805 = vrot.slane %v26, 2
  %v806 = vsel %vm782, %v804, %v805
  %v807 = vrot.slane %v27, 2
  %v808 = vrot.slane %v28, 2
  %v809 = vsel %vm782, %v807, %v808
  %v810 = vrot.slane %v29, 2
  %v811 = vrot.slane %v30, 2
  %v812 = vsel %vm782, %v810, %v811
  %v813 = vrot.slane %v31, 2
  %v814 = vrot.slane %v32, 2
  %v815 = vsel %vm782, %v813, %v814
  %v816 = vrot.slane %v33, 2
  %v817 = vrot.slane %v34, 2
  %v818 = vsel %vm782, %v816, %v817
  %v819 = vrot.slane %v35, 2
  %v820 = vrot.slane %v36, 2
  %v821 = vsel %vm782, %v819, %v820
  %v822 = vrot.slane %v37, 2
  %v823 = vrot.slane %v38, 2
  %v824 = vsel %vm782, %v822, %v823
  %v825 = vrot.slane %v39, 2
  %v826 = vrot.slane %v40, 2
  %v827 = vsel %vm782, %v825, %v826
  %v828 = vrot.slane %v41, 2
  %v829 = vrot.slane %v42, 2
  %v830 = vsel %vm782, %v828, %v829
  %v863 = vadd.f32 %v11, %v785
  %v864 = vadd.f32 %v12, %v784
  %v865 = vadd.f32 %v13, %v788
  %v866 = vadd.f32 %v14, %v787
  %v867 = vadd.f32 %v15, %v791
  %v868 = vadd.f32 %v16, %v790
  %v869 = vadd.f32 %v17, %v794
  %v870 = vadd.f32 %v18, %v793
  %v871 = vadd.f32 %v19, %v797
  %v872 = vadd.f32 %v20, %v796
  %v873 = vadd.f32 %v21, %v800
  %v874 = vadd.f32 %v22, %v799
  %v875 = vadd.f32 %v23, %v803
  %v876 = vadd.f32 %v24, %v802
  %v877 = vadd.f32 %v25, %v806
  %v878 = vadd.f32 %v26, %v805
  %v879 = vadd.f32 %v27, %v809
  %v880 = vadd.f32 %v28, %v808
  %v881 = vadd.f32 %v29, %v812
  %v882 = vadd.f32 %v30, %v811
  %v883 = vadd.f32 %v31, %v815
  %v884 = vadd.f32 %v32, %v814
  %v885 = vadd.f32 %v33, %v818
  %v886 = vadd.f32 %v34, %v817
  %v887 = vadd.f32 %v35, %v821
  %v888 = vadd.f32 %v36, %v820
  %v889 = vadd.f32 %v37, %v824
  %v890 = vadd.f32 %v38, %v823
  %v891 = vadd.f32 %v39, %v827
  %v892 = vadd.f32 %v40, %v826
  %v893 = vadd.f32 %v41, %v830
  %v894 = vadd.f32 %v42, %v829
  %v895 = vmul.f32 %v863, 0.19071282
  %v896 = vmul.f32 %v864, 0.19071282
  %v897 = vmul.f32 %v865, 0.19071282
  %v898 = vmul.f32 %v866, 0.19071282
  %v899 = vmul.f32 %v867, 0.19071282
  %v900 = vmul.f32 %v868, 0.19071282
  %v901 = vmul.f32 %v869, 0.19071282
  %v902 = vmul.f32 %v870, 0.19071282
  %v903 = vmul.f32 %v871, 0.19071282
  %v904 = vmul.f32 %v872, 0.19071282
  %v905 = vmul.f32 %v873, 0.19071282
  %v906 = vmul.f32 %v874, 0.19071282
  %v907 = vmul.f32 %v875, 0.19071282
  %v908 = vmul.f32 %v876, 0.19071282
  %v909 = vmul.f32 %v877, 0.19071282
  %v910 = vmul.f32 %v878, 0.19071282
  %v911 = vmul.f32 %v879, 0.19071282
  %v912 = vmul.f32 %v880, 0.19071282
  %v913 = vmul.f32 %v881, 0.19071282
  %v914 = vmul.f32 %v882, 0.19071282
  %v915 = vmul.f32 %v883, 0.19071282
  %v916 = vmul.f32 %v884, 0.19071282
  %v917 = vmul.f32 %v885, 0.19071282
  %v918 = vmul.f32 %v886, 0.19071282
  %v919 = vmul.f32 %v887, 0.19071282
  %v920 = vmul.f32 %v888, 0.19071282
  %v921 = vmul.f32 %v889, 0.19071282
  %v922 = vmul.f32 %v890, 0.19071282
  %v923 = vmul.f32 %v891, 0.19071282
  %v924 = vmul.f32 %v892, 0.19071282
  %v925 = vmul.f32 %v893, 0.19071282
  %v926 = vmul.f32 %v894, 0.19071282
  %v959 = vrot.slane %v895, 2
  %v960 = vrot.slane %v896, 2
  %v961 = vsel %vm782, %v959, %v960
  %v962 = vrot.slane %v897, 2
  %v963 = vrot.slane %v898, 2
  %v964 = vsel %vm782, %v962, %v963
  %v965 = vrot.slane %v899, 2
  %v966 = vrot.slane %v900, 2
  %v967 = vsel %vm782, %v965, %v966
  %v968 = vrot.slane %v901, 2
  %v969 = vrot.slane %v902, 2
  %v970 = vsel %vm782, %v968, %v969
  %v971 = vrot.slane %v903, 2
  %v972 = vrot.slane %v904, 2
  %v973 = vsel %vm782, %v971, %v972
  %v974 = vrot.slane %v905, 2
  %v975 = vrot.slane %v906, 2
  %v976 = vsel %vm782, %v974, %v975
  %v977 = vrot.slane %v907, 2
  %v978 = vrot.slane %v908, 2
  %v979 = vsel %vm782, %v977, %v978
  %v980 = vrot.slane %v909, 2
  %v981 = vrot.slane %v910, 2
  %v982 = vsel %vm782, %v980, %v981
  %v983 = vrot.slane %v911, 2
  %v984 = vrot.slane %v912, 2
  %v985 = vsel %vm782, %v983, %v984
  %v986 = vrot.slane %v913, 2
  %v987 = vrot.slane %v914, 2
  %v988 = vsel %vm782, %v986, %v987
  %v989 = vrot.slane %v915, 2
  %v990 = vrot.slane %v916, 2
  %v991 = vsel %vm782, %v989, %v990
  %v992 = vrot.slane %v917, 2
  %v993 = vrot.slane %v918, 2
  %v994 = vsel %vm782, %v992, %v993
  %v995 = vrot.slane %v919, 2
  %v996 = vrot.slane %v920, 2
  %v997 = vsel %vm782, %v995, %v996
  %v998 = vrot.slane %v921, 2
  %v999 = vrot.slane %v922, 2
  %v1000 = vsel %vm782, %v998, %v999
  %v1001 = vrot.slane %v923, 2
  %v1002 = vrot.slane %v924, 2
  %v1003 = vsel %vm782, %v1001, %v1002
  %v1004 = vrot.slane %v925, 2
  %v1005 = vrot.slane %v926, 2
  %v1006 = vsel %vm782, %v1004, %v1005
  %v1039 = vadd.f32 %v574, %v961
  %v1040 = vadd.f32 %v575, %v960
  %v1041 = vadd.f32 %v576, %v964
  %v1042 = vadd.f32 %v577, %v963
  %v1043 = vadd.f32 %v578, %v967
  %v1044 = vadd.f32 %v579, %v966
  %v1045 = vadd.f32 %v580, %v970
  %v1046 = vadd.f32 %v581, %v969
  %v1047 = vadd.f32 %v582, %v973
  %v1048 = vadd.f32 %v583, %v972
  %v1049 = vadd.f32 %v584, %v976
  %v1050 = vadd.f32 %v585, %v975
  %v1051 = vadd.f32 %v586, %v979
  %v1052 = vadd.f32 %v587, %v978
  %v1053 = vadd.f32 %v588, %v982
  %v1054 = vadd.f32 %v589, %v981
  %v1055 = vadd.f32 %v590, %v985
  %v1056 = vadd.f32 %v591, %v984
  %v1057 = vadd.f32 %v592, %v988
  %v1058 = vadd.f32 %v593, %v987
  %v1059 = vadd.f32 %v594, %v991
  %v1060 = vadd.f32 %v595, %v990
  %v1061 = vadd.f32 %v596, %v994
  %v1062 = vadd.f32 %v597, %v993
  %v1063 = vadd.f32 %v598, %v997
  %v1064 = vadd.f32 %v599, %v996
  %v1065 = vadd.f32 %v600, %v1000
  %v1066 = vadd.f32 %v601, %v999
  %v1067 = vadd.f32 %v602, %v1003
  %v1068 = vadd.f32 %v603, %v1002
  %v1069 = vadd.f32 %v604, %v1006
  %v1070 = vadd.f32 %v605, %v1005
  %v1071 = vmul.f32 %v863, 0.16311122
  %v1072 = vmul.f32 %v864, 0.16311122
  %v1073 = vmul.f32 %v865, 0.16311122
  %v1074 = vmul.f32 %v866, 0.16311122
  %v1075 = vmul.f32 %v867, 0.16311122
  %v1076 = vmul.f32 %v868, 0.16311122
  %v1077 = vmul.f32 %v869, 0.16311122
  %v1078 = vmul.f32 %v870, 0.16311122
  %v1079 = vmul.f32 %v871, 0.16311122
  %v1080 = vmul.f32 %v872, 0.16311122
  %v1081 = vmul.f32 %v873, 0.16311122
  %v1082 = vmul.f32 %v874, 0.16311122
  %v1083 = vmul.f32 %v875, 0.16311122
  %v1084 = vmul.f32 %v876, 0.16311122
  %v1085 = vmul.f32 %v877, 0.16311122
  %v1086 = vmul.f32 %v878, 0.16311122
  %v1087 = vmul.f32 %v879, 0.16311122
  %v1088 = vmul.f32 %v880, 0.16311122
  %v1089 = vmul.f32 %v881, 0.16311122
  %v1090 = vmul.f32 %v882, 0.16311122
  %v1091 = vmul.f32 %v883, 0.16311122
  %v1092 = vmul.f32 %v884, 0.16311122
  %v1093 = vmul.f32 %v885, 0.16311122
  %v1094 = vmul.f32 %v886, 0.16311122
  %v1095 = vmul.f32 %v887, 0.16311122
  %v1096 = vmul.f32 %v888, 0.16311122
  %v1097 = vmul.f32 %v889, 0.16311122
  %v1098 = vmul.f32 %v890, 0.16311122
  %v1099 = vmul.f32 %v891, 0.16311122
  %v1100 = vmul.f32 %v892, 0.16311122
  %v1101 = vmul.f32 %v893, 0.16311122
  %v1102 = vmul.f32 %v894, 0.16311122
  %v1135 = vrot.slane %v1071, 2
  %v1136 = vrot.slane %v1072, 2
  %v1137 = vsel %vm782, %v1135, %v1136
  %v1138 = vrot.slane %v1073, 2
  %v1139 = vrot.slane %v1074, 2
  %v1140 = vsel %vm782, %v1138, %v1139
  %v1141 = vrot.slane %v1075, 2
  %v1142 = vrot.slane %v1076, 2
  %v1143 = vsel %vm782, %v1141, %v1142
  %v1144 = vrot.slane %v1077, 2
  %v1145 = vrot.slane %v1078, 2
  %v1146 = vsel %vm782, %v1144, %v1145
  %v1147 = vrot.slane %v1079, 2
  %v1148 = vrot.slane %v1080, 2
  %v1149 = vsel %vm782, %v1147, %v1148
  %v1150 = vrot.slane %v1081, 2
  %v1151 = vrot.slane %v1082, 2
  %v1152 = vsel %vm782, %v1150, %v1151
  %v1153 = vrot.slane %v1083, 2
  %v1154 = vrot.slane %v1084, 2
  %v1155 = vsel %vm782, %v1153, %v1154
  %v1156 = vrot.slane %v1085, 2
  %v1157 = vrot.slane %v1086, 2
  %v1158 = vsel %vm782, %v1156, %v1157
  %v1159 = vrot.slane %v1087, 2
  %v1160 = vrot.slane %v1088, 2
  %v1161 = vsel %vm782, %v1159, %v1160
  %v1162 = vrot.slane %v1089, 2
  %v1163 = vrot.slane %v1090, 2
  %v1164 = vsel %vm782, %v1162, %v1163
  %v1165 = vrot.slane %v1091, 2
  %v1166 = vrot.slane %v1092, 2
  %v1167 = vsel %vm782, %v1165, %v1166
  %v1168 = vrot.slane %v1093, 2
  %v1169 = vrot.slane %v1094, 2
  %v1170 = vsel %vm782, %v1168, %v1169
  %v1171 = vrot.slane %v1095, 2
  %v1172 = vrot.slane %v1096, 2
  %v1173 = vsel %vm782, %v1171, %v1172
  %v1174 = vrot.slane %v1097, 2
  %v1175 = vrot.slane %v1098, 2
  %v1176 = vsel %vm782, %v1174, %v1175
  %v1177 = vrot.slane %v1099, 2
  %v1178 = vrot.slane %v1100, 2
  %v1179 = vsel %vm782, %v1177, %v1178
  %v1180 = vrot.slane %v1101, 2
  %v1181 = vrot.slane %v1102, 2
  %v1182 = vsel %vm782, %v1180, %v1181
  %v1215 = vadd.f32 %v750, %v1137
  %v1216 = vadd.f32 %v751, %v1136
  %v1217 = vadd.f32 %v752, %v1140
  %v1218 = vadd.f32 %v753, %v1139
  %v1219 = vadd.f32 %v754, %v1143
  %v1220 = vadd.f32 %v755, %v1142
  %v1221 = vadd.f32 %v756, %v1146
  %v1222 = vadd.f32 %v757, %v1145
  %v1223 = vadd.f32 %v758, %v1149
  %v1224 = vadd.f32 %v759, %v1148
  %v1225 = vadd.f32 %v760, %v1152
  %v1226 = vadd.f32 %v761, %v1151
  %v1227 = vadd.f32 %v762, %v1155
  %v1228 = vadd.f32 %v763, %v1154
  %v1229 = vadd.f32 %v764, %v1158
  %v1230 = vadd.f32 %v765, %v1157
  %v1231 = vadd.f32 %v766, %v1161
  %v1232 = vadd.f32 %v767, %v1160
  %v1233 = vadd.f32 %v768, %v1164
  %v1234 = vadd.f32 %v769, %v1163
  %v1235 = vadd.f32 %v770, %v1167
  %v1236 = vadd.f32 %v771, %v1166
  %v1237 = vadd.f32 %v772, %v1170
  %v1238 = vadd.f32 %v773, %v1169
  %v1239 = vadd.f32 %v774, %v1173
  %v1240 = vadd.f32 %v775, %v1172
  %v1241 = vadd.f32 %v776, %v1176
  %v1242 = vadd.f32 %v777, %v1175
  %v1243 = vadd.f32 %v778, %v1179
  %v1244 = vadd.f32 %v779, %v1178
  %v1245 = vadd.f32 %v780, %v1182
  %v1246 = vadd.f32 %v781, %v1181
  %v1247 = vmul.f32 %v11, 0.21610594
  %v1248 = vmul.f32 %v12, 0.21610594
  %v1249 = vmul.f32 %v13, 0.21610594
  %v1250 = vmul.f32 %v14, 0.21610594
  %v1251 = vmul.f32 %v15, 0.21610594
  %v1252 = vmul.f32 %v16, 0.21610594
  %v1253 = vmul.f32 %v17, 0.21610594
  %v1254 = vmul.f32 %v18, 0.21610594
  %v1255 = vmul.f32 %v19, 0.21610594
  %v1256 = vmul.f32 %v20, 0.21610594
  %v1257 = vmul.f32 %v21, 0.21610594
  %v1258 = vmul.f32 %v22, 0.21610594
  %v1259 = vmul.f32 %v23, 0.21610594
  %v1260 = vmul.f32 %v24, 0.21610594
  %v1261 = vmul.f32 %v25, 0.21610594
  %v1262 = vmul.f32 %v26, 0.21610594
  %v1263 = vmul.f32 %v27, 0.21610594
  %v1264 = vmul.f32 %v28, 0.21610594
  %v1265 = vmul.f32 %v29, 0.21610594
  %v1266 = vmul.f32 %v30, 0.21610594
  %v1267 = vmul.f32 %v31, 0.21610594
  %v1268 = vmul.f32 %v32, 0.21610594
  %v1269 = vmul.f32 %v33, 0.21610594
  %v1270 = vmul.f32 %v34, 0.21610594
  %v1271 = vmul.f32 %v35, 0.21610594
  %v1272 = vmul.f32 %v36, 0.21610594
  %v1273 = vmul.f32 %v37, 0.21610594
  %v1274 = vmul.f32 %v38, 0.21610594
  %v1275 = vmul.f32 %v39, 0.21610594
  %v1276 = vmul.f32 %v40, 0.21610594
  %v1277 = vmul.f32 %v41, 0.21610594
  %v1278 = vmul.f32 %v42, 0.21610594
  %vm1311 = vcmask 1044480
  %v1312 = vrot.slane %v1247, 3
  %v1313 = vrot.slane %v1248, 3
  %v1314 = vsel %vm1311, %v1312, %v1313
  %v1315 = vrot.slane %v1249, 3
  %v1316 = vrot.slane %v1250, 3
  %v1317 = vsel %vm1311, %v1315, %v1316
  %v1318 = vrot.slane %v1251, 3
  %v1319 = vrot.slane %v1252, 3
  %v1320 = vsel %vm1311, %v1318, %v1319
  %v1321 = vrot.slane %v1253, 3
  %v1322 = vrot.slane %v1254, 3
  %v1323 = vsel %vm1311, %v1321, %v1322
  %v1324 = vrot.slane %v1255, 3
  %v1325 = vrot.slane %v1256, 3
  %v1326 = vsel %vm1311, %v1324, %v1325
  %v1327 = vrot.slane %v1257, 3
  %v1328 = vrot.slane %v1258, 3
  %v1329 = vsel %vm1311, %v1327, %v1328
  %v1330 = vrot.slane %v1259, 3
  %v1331 = vrot.slane %v1260, 3
  %v1332 = vsel %vm1311, %v1330, %v1331
  %v1333 = vrot.slane %v1261, 3
  %v1334 = vrot.slane %v1262, 3
  %v1335 = vsel %vm1311, %v1333, %v1334
  %v1336 = vrot.slane %v1263, 3
  %v1337 = vrot.slane %v1264, 3
  %v1338 = vsel %vm1311, %v1336, %v1337
  %v1339 = vrot.slane %v1265, 3
  %v1340 = vrot.slane %v1266, 3
  %v1341 = vsel %vm1311, %v1339, %v1340
  %v1342 = vrot.slane %v1267, 3
  %v1343 = vrot.slane %v1268, 3
  %v1344 = vsel %vm1311, %v1342, %v1343
  %v1345 = vrot.slane %v1269, 3
  %v1346 = vrot.slane %v1270, 3
  %v1347 = vsel %vm1311, %v1345, %v1346
  %v1348 = vrot.slane %v1271, 3
  %v1349 = vrot.slane %v1272, 3
  %v1350 = vsel %vm1311, %v1348, %v1349
  %v1351 = vrot.slane %v1273, 3
  %v1352 = vrot.slane %v1274, 3
  %v1353 = vsel %vm1311, %v1351, %v1352
  %v1354 = vrot.slane %v1275, 3
  %v1355 = vrot.slane %v1276, 3
  %v1356 = vsel %vm1311, %v1354, %v1355
  %v1357 = vrot.slane %v1277, 3
  %v1358 = vrot.slane %v1278, 3
  %v1359 = vsel %vm1311, %v1357, %v1358
  %v1392 = vadd.f32 %v1039, %v1314
  %v1393 = vadd.f32 %v1040, %v1313
  %v1394 = vadd.f32 %v1041, %v1317
  %v1395 = vadd.f32 %v1042, %v1316
  %v1396 = vadd.f32 %v1043, %v1320
  %v1397 = vadd.f32 %v1044, %v1319
  %v1398 = vadd.f32 %v1045, %v1323
  %v1399 = vadd.f32 %v1046, %v1322
  %v1400 = vadd.f32 %v1047, %v1326
  %v1401 = vadd.f32 %v1048, %v1325
  %v1402 = vadd.f32 %v1049, %v1329
  %v1403 = vadd.f32 %v1050, %v1328
  %v1404 = vadd.f32 %v1051, %v1332
  %v1405 = vadd.f32 %v1052, %v1331
  %v1406 = vadd.f32 %v1053, %v1335
  %v1407 = vadd.f32 %v1054, %v1334
  %v1408 = vadd.f32 %v1055, %v1338
  %v1409 = vadd.f32 %v1056, %v1337
  %v1410 = vadd.f32 %v1057, %v1341
  %v1411 = vadd.f32 %v1058, %v1340
  %v1412 = vadd.f32 %v1059, %v1344
  %v1413 = vadd.f32 %v1060, %v1343
  %v1414 = vadd.f32 %v1061, %v1347
  %v1415 = vadd.f32 %v1062, %v1346
  %v1416 = vadd.f32 %v1063, %v1350
  %v1417 = vadd.f32 %v1064, %v1349
  %v1418 = vadd.f32 %v1065, %v1353
  %v1419 = vadd.f32 %v1066, %v1352
  %v1420 = vadd.f32 %v1067, %v1356
  %v1421 = vadd.f32 %v1068, %v1355
  %v1422 = vadd.f32 %v1069, %v1359
  %v1423 = vadd.f32 %v1070, %v1358
  %v1424 = vmul.f32 %v11, 0.17127329
  %v1425 = vmul.f32 %v12, 0.17127329
  %v1426 = vmul.f32 %v13, 0.17127329
  %v1427 = vmul.f32 %v14, 0.17127329
  %v1428 = vmul.f32 %v15, 0.17127329
  %v1429 = vmul.f32 %v16, 0.17127329
  %v1430 = vmul.f32 %v17, 0.17127329
  %v1431 = vmul.f32 %v18, 0.17127329
  %v1432 = vmul.f32 %v19, 0.17127329
  %v1433 = vmul.f32 %v20, 0.17127329
  %v1434 = vmul.f32 %v21, 0.17127329
  %v1435 = vmul.f32 %v22, 0.17127329
  %v1436 = vmul.f32 %v23, 0.17127329
  %v1437 = vmul.f32 %v24, 0.17127329
  %v1438 = vmul.f32 %v25, 0.17127329
  %v1439 = vmul.f32 %v26, 0.17127329
  %v1440 = vmul.f32 %v27, 0.17127329
  %v1441 = vmul.f32 %v28, 0.17127329
  %v1442 = vmul.f32 %v29, 0.17127329
  %v1443 = vmul.f32 %v30, 0.17127329
  %v1444 = vmul.f32 %v31, 0.17127329
  %v1445 = vmul.f32 %v32, 0.17127329
  %v1446 = vmul.f32 %v33, 0.17127329
  %v1447 = vmul.f32 %v34, 0.17127329
  %v1448 = vmul.f32 %v35, 0.17127329
  %v1449 = vmul.f32 %v36, 0.17127329
  %v1450 = vmul.f32 %v37, 0.17127329
  %v1451 = vmul.f32 %v38, 0.17127329
  %v1452 = vmul.f32 %v39, 0.17127329
  %v1453 = vmul.f32 %v40, 0.17127329
  %v1454 = vmul.f32 %v41, 0.17127329
  %v1455 = vmul.f32 %v42, 0.17127329
  %v1488 = vrot.slane %v1424, 3
  %v1489 = vrot.slane %v1425, 3
  %v1490 = vsel %vm1311, %v1488, %v1489
  %v1491 = vrot.slane %v1426, 3
  %v1492 = vrot.slane %v1427, 3
  %v1493 = vsel %vm1311, %v1491, %v1492
  %v1494 = vrot.slane %v1428, 3
  %v1495 = vrot.slane %v1429, 3
  %v1496 = vsel %vm1311, %v1494, %v1495
  %v1497 = vrot.slane %v1430, 3
  %v1498 = vrot.slane %v1431, 3
  %v1499 = vsel %vm1311, %v1497, %v1498
  %v1500 = vrot.slane %v1432, 3
  %v1501 = vrot.slane %v1433, 3
  %v1502 = vsel %vm1311, %v1500, %v1501
  %v1503 = vrot.slane %v1434, 3
  %v1504 = vrot.slane %v1435, 3
  %v1505 = vsel %vm1311, %v1503, %v1504
  %v1506 = vrot.slane %v1436, 3
  %v1507 = vrot.slane %v1437, 3
  %v1508 = vsel %vm1311, %v1506, %v1507
  %v1509 = vrot.slane %v1438, 3
  %v1510 = vrot.slane %v1439, 3
  %v1511 = vsel %vm1311, %v1509, %v1510
  %v1512 = vrot.slane %v1440, 3
  %v1513 = vrot.slane %v1441, 3
  %v1514 = vsel %vm1311, %v1512, %v1513
  %v1515 = vrot.slane %v1442, 3
  %v1516 = vrot.slane %v1443, 3
  %v1517 = vsel %vm1311, %v1515, %v1516
  %v1518 = vrot.slane %v1444, 3
  %v1519 = vrot.slane %v1445, 3
  %v1520 = vsel %vm1311, %v1518, %v1519
  %v1521 = vrot.slane %v1446, 3
  %v1522 = vrot.slane %v1447, 3
  %v1523 = vsel %vm1311, %v1521, %v1522
  %v1524 = vrot.slane %v1448, 3
  %v1525 = vrot.slane %v1449, 3
  %v1526 = vsel %vm1311, %v1524, %v1525
  %v1527 = vrot.slane %v1450, 3
  %v1528 = vrot.slane %v1451, 3
  %v1529 = vsel %vm1311, %v1527, %v1528
  %v1530 = vrot.slane %v1452, 3
  %v1531 = vrot.slane %v1453, 3
  %v1532 = vsel %vm1311, %v1530, %v1531
  %v1533 = vrot.slane %v1454, 3
  %v1534 = vrot.slane %v1455, 3
  %v1535 = vsel %vm1311, %v1533, %v1534
  %v1568 = vadd.f32 %v1215, %v1490
  %v1569 = vadd.f32 %v1216, %v1489
  %v1570 = vadd.f32 %v1217, %v1493
  %v1571 = vadd.f32 %v1218, %v1492
  %v1572 = vadd.f32 %v1219, %v1496
  %v1573 = vadd.f32 %v1220, %v1495
  %v1574 = vadd.f32 %v1221, %v1499
  %v1575 = vadd.f32 %v1222, %v1498
  %v1576 = vadd.f32 %v1223, %v1502
  %v1577 = vadd.f32 %v1224, %v1501
  %v1578 = vadd.f32 %v1225, %v1505
  %v1579 = vadd.f32 %v1226, %v1504
  %v1580 = vadd.f32 %v1227, %v1508
  %v1581 = vadd.f32 %v1228, %v1507
  %v1582 = vadd.f32 %v1229, %v1511
  %v1583 = vadd.f32 %v1230, %v1510
  %v1584 = vadd.f32 %v1231, %v1514
  %v1585 = vadd.f32 %v1232, %v1513
  %v1586 = vadd.f32 %v1233, %v1517
  %v1587 = vadd.f32 %v1234, %v1516
  %v1588 = vadd.f32 %v1235, %v1520
  %v1589 = vadd.f32 %v1236, %v1519
  %v1590 = vadd.f32 %v1237, %v1523
  %v1591 = vadd.f32 %v1238, %v1522
  %v1592 = vadd.f32 %v1239, %v1526
  %v1593 = vadd.f32 %v1240, %v1525
  %v1594 = vadd.f32 %v1241, %v1529
  %v1595 = vadd.f32 %v1242, %v1528
  %v1596 = vadd.f32 %v1243, %v1532
  %v1597 = vadd.f32 %v1244, %v1531
  %v1598 = vadd.f32 %v1245, %v1535
  %v1599 = vadd.f32 %v1246, %v1534
  %v1600 = vadd.f32 %v1392, %v1404
  %v1601 = vadd.f32 %v1393, %v1405
  %v1602 = vadd.f32 %v1394, %v1406
  %v1603 = vadd.f32 %v1395, %v1407
  %v1604 = vadd.f32 %v1396, %v1408
  %v1605 = vadd.f32 %v1397, %v1409
  %v1606 = vadd.f32 %v1398, %v1410
  %v1607 = vadd.f32 %v1399, %v1411
  %v1608 = vadd.f32 %v1400, %v1412
  %v1609 = vadd.f32 %v1401, %v1413
  %v1610 = vadd.f32 %v1402, %v1414
  %v1611 = vadd.f32 %v1403, %v1415
  %v1612 = vadd.f32 %v1404, %v1416
  %v1613 = vadd.f32 %v1405, %v1417
  %v1614 = vadd.f32 %v1406, %v1418
  %v1615 = vadd.f32 %v1407, %v1419
  %v1616 = vadd.f32 %v1408, %v1420
  %v1617 = vadd.f32 %v1409, %v1421
  %v1618 = vadd.f32 %v1410, %v1422
  %v1619 = vadd.f32 %v1411, %v1423
  %v1620 = vadd.f32 %v1568, %v1580
  %v1621 = vadd.f32 %v1569, %v1581
  %v1622 = vadd.f32 %v1570, %v1582
  %v1623 = vadd.f32 %v1571, %v1583
  %v1624 = vadd.f32 %v1572, %v1584
  %v1625 = vadd.f32 %v1573, %v1585
  %v1626 = vadd.f32 %v1574, %v1586
  %v1627 = vadd.f32 %v1575, %v1587
  %v1628 = vadd.f32 %v1576, %v1588
  %v1629 = vadd.f32 %v1577, %v1589
  %v1630 = vadd.f32 %v1578, %v1590
  %v1631 = vadd.f32 %v1579, %v1591
  %v1632 = vadd.f32 %v1580, %v1592
  %v1633 = vadd.f32 %v1581, %v1593
  %v1634 = vadd.f32 %v1582, %v1594
  %v1635 = vadd.f32 %v1583, %v1595
  %v1636 = vadd.f32 %v1584, %v1596
  %v1637 = vadd.f32 %v1585, %v1597
  %v1638 = vadd.f32 %v1586, %v1598
  %v1639 = vadd.f32 %v1587, %v1599
  %v1640 = vmul.f32 %v1600, 0.07015932
  %v1641 = vmul.f32 %v1601, 0.07015932
  %v1642 = vmul.f32 %v1602, 0.07015932
  %v1643 = vmul.f32 %v1603, 0.07015932
  %v1644 = vmul.f32 %v1604, 0.07015932
  %v1645 = vmul.f32 %v1605, 0.07015932
  %v1646 = vmul.f32 %v1606, 0.07015932
  %v1647 = vmul.f32 %v1607, 0.07015932
  %v1648 = vmul.f32 %v1608, 0.07015932
  %v1649 = vmul.f32 %v1609, 0.07015932
  %v1650 = vmul.f32 %v1610, 0.07015932
  %v1651 = vmul.f32 %v1611, 0.07015932
  %v1652 = vmul.f32 %v1612, 0.07015932
  %v1653 = vmul.f32 %v1613, 0.07015932
  %v1654 = vmul.f32 %v1614, 0.07015932
  %v1655 = vmul.f32 %v1615, 0.07015932
  %v1656 = vmul.f32 %v1616, 0.07015932
  %v1657 = vmul.f32 %v1617, 0.07015932
  %v1658 = vmul.f32 %v1618, 0.07015932
  %v1659 = vmul.f32 %v1619, 0.07015932
  %v1660 = vmul.f32 %v1620, 0.110366575
  %v1661 = vmul.f32 %v1621, 0.110366575
  %v1662 = vmul.f32 %v1622, 0.110366575
  %v1663 = vmul.f32 %v1623, 0.110366575
  %v1664 = vmul.f32 %v1624, 0.110366575
  %v1665 = vmul.f32 %v1625, 0.110366575
  %v1666 = vmul.f32 %v1626, 0.110366575
  %v1667 = vmul.f32 %v1627, 0.110366575
  %v1668 = vmul.f32 %v1628, 0.110366575
  %v1669 = vmul.f32 %v1629, 0.110366575
  %v1670 = vmul.f32 %v1630, 0.110366575
  %v1671 = vmul.f32 %v1631, 0.110366575
  %v1672 = vmul.f32 %v1632, 0.110366575
  %v1673 = vmul.f32 %v1633, 0.110366575
  %v1674 = vmul.f32 %v1634, 0.110366575
  %v1675 = vmul.f32 %v1635, 0.110366575
  %v1676 = vmul.f32 %v1636, 0.110366575
  %v1677 = vmul.f32 %v1637, 0.110366575
  %v1678 = vmul.f32 %v1638, 0.110366575
  %v1679 = vmul.f32 %v1639, 0.110366575
  %v1680 = vsub.f32 %v1640, %v1660
  %v1681 = vsub.f32 %v1641, %v1661
  %v1682 = vsub.f32 %v1642, %v1662
  %v1683 = vsub.f32 %v1643, %v1663
  %v1684 = vsub.f32 %v1644, %v1664
  %v1685 = vsub.f32 %v1645, %v1665
  %v1686 = vsub.f32 %v1646, %v1666
  %v1687 = vsub.f32 %v1647, %v1667
  %v1688 = vsub.f32 %v1648, %v1668
  %v1689 = vsub.f32 %v1649, %v1669
  %v1690 = vsub.f32 %v1650, %v1670
  %v1691 = vsub.f32 %v1651, %v1671
  %v1692 = vsub.f32 %v1652, %v1672
  %v1693 = vsub.f32 %v1653, %v1673
  %v1694 = vsub.f32 %v1654, %v1674
  %v1695 = vsub.f32 %v1655, %v1675
  %v1696 = vsub.f32 %v1656, %v1676
  %v1697 = vsub.f32 %v1657, %v1677
  %v1698 = vsub.f32 %v1658, %v1678
  %v1699 = vsub.f32 %v1659, %v1679
  %v1700 = vadd.f32 %v1680, 0.0
  %v1701 = vadd.f32 %v1681, 0.0
  %v1702 = vadd.f32 %v1682, 0.0
  %v1703 = vadd.f32 %v1683, 0.0
  %v1704 = vadd.f32 %v1684, 0.0
  %v1705 = vadd.f32 %v1685, 0.0
  %v1706 = vadd.f32 %v1686, 0.0
  %v1707 = vadd.f32 %v1687, 0.0
  %v1708 = vadd.f32 %v1688, 0.0
  %v1709 = vadd.f32 %v1689, 0.0
  %v1710 = vadd.f32 %v1690, 0.0
  %v1711 = vadd.f32 %v1691, 0.0
  %v1712 = vadd.f32 %v1692, 0.0
  %v1713 = vadd.f32 %v1693, 0.0
  %v1714 = vadd.f32 %v1694, 0.0
  %v1715 = vadd.f32 %v1695, 0.0
  %v1716 = vadd.f32 %v1696, 0.0
  %v1717 = vadd.f32 %v1697, 0.0
  %v1718 = vadd.f32 %v1698, 0.0
  %v1719 = vadd.f32 %v1699, 0.0
  %v1720 = vadd.f32 %v1394, %v1402
  %v1721 = vadd.f32 %v1395, %v1403
  %v1722 = vadd.f32 %v1396, %v1404
  %v1723 = vadd.f32 %v1397, %v1405
  %v1724 = vadd.f32 %v1398, %v1406
  %v1725 = vadd.f32 %v1399, %v1407
  %v1726 = vadd.f32 %v1400, %v1408
  %v1727 = vadd.f32 %v1401, %v1409
  %v1728 = vadd.f32 %v1402, %v1410
  %v1729 = vadd.f32 %v1403, %v1411
  %v1730 = vadd.f32 %v1404, %v1412
  %v1731 = vadd.f32 %v1405, %v1413
  %v1732 = vadd.f32 %v1406, %v1414
  %v1733 = vadd.f32 %v1407, %v1415
  %v1734 = vadd.f32 %v1408, %v1416
  %v1735 = vadd.f32 %v1409, %v1417
  %v1736 = vadd.f32 %v1410, %v1418
  %v1737 = vadd.f32 %v1411, %v1419
  %v1738 = vadd.f32 %v1412, %v1420
  %v1739 = vadd.f32 %v1413, %v1421
  %v1740 = vadd.f32 %v1570, %v1578
  %v1741 = vadd.f32 %v1571, %v1579
  %v1742 = vadd.f32 %v1572, %v1580
  %v1743 = vadd.f32 %v1573, %v1581
  %v1744 = vadd.f32 %v1574, %v1582
  %v1745 = vadd.f32 %v1575, %v1583
  %v1746 = vadd.f32 %v1576, %v1584
  %v1747 = vadd.f32 %v1577, %v1585
  %v1748 = vadd.f32 %v1578, %v1586
  %v1749 = vadd.f32 %v1579, %v1587
  %v1750 = vadd.f32 %v1580, %v1588
  %v1751 = vadd.f32 %v1581, %v1589
  %v1752 = vadd.f32 %v1582, %v1590
  %v1753 = vadd.f32 %v1583, %v1591
  %v1754 = vadd.f32 %v1584, %v1592
  %v1755 = vadd.f32 %v1585, %v1593
  %v1756 = vadd.f32 %v1586, %v1594
  %v1757 = vadd.f32 %v1587, %v1595
  %v1758 = vadd.f32 %v1588, %v1596
  %v1759 = vadd.f32 %v1589, %v1597
  %v1760 = vmul.f32 %v1720, 0.13107488
  %v1761 = vmul.f32 %v1721, 0.13107488
  %v1762 = vmul.f32 %v1722, 0.13107488
  %v1763 = vmul.f32 %v1723, 0.13107488
  %v1764 = vmul.f32 %v1724, 0.13107488
  %v1765 = vmul.f32 %v1725, 0.13107488
  %v1766 = vmul.f32 %v1726, 0.13107488
  %v1767 = vmul.f32 %v1727, 0.13107488
  %v1768 = vmul.f32 %v1728, 0.13107488
  %v1769 = vmul.f32 %v1729, 0.13107488
  %v1770 = vmul.f32 %v1730, 0.13107488
  %v1771 = vmul.f32 %v1731, 0.13107488
  %v1772 = vmul.f32 %v1732, 0.13107488
  %v1773 = vmul.f32 %v1733, 0.13107488
  %v1774 = vmul.f32 %v1734, 0.13107488
  %v1775 = vmul.f32 %v1735, 0.13107488
  %v1776 = vmul.f32 %v1736, 0.13107488
  %v1777 = vmul.f32 %v1737, 0.13107488
  %v1778 = vmul.f32 %v1738, 0.13107488
  %v1779 = vmul.f32 %v1739, 0.13107488
  %v1780 = vmul.f32 %v1740, 0.14088556
  %v1781 = vmul.f32 %v1741, 0.14088556
  %v1782 = vmul.f32 %v1742, 0.14088556
  %v1783 = vmul.f32 %v1743, 0.14088556
  %v1784 = vmul.f32 %v1744, 0.14088556
  %v1785 = vmul.f32 %v1745, 0.14088556
  %v1786 = vmul.f32 %v1746, 0.14088556
  %v1787 = vmul.f32 %v1747, 0.14088556
  %v1788 = vmul.f32 %v1748, 0.14088556
  %v1789 = vmul.f32 %v1749, 0.14088556
  %v1790 = vmul.f32 %v1750, 0.14088556
  %v1791 = vmul.f32 %v1751, 0.14088556
  %v1792 = vmul.f32 %v1752, 0.14088556
  %v1793 = vmul.f32 %v1753, 0.14088556
  %v1794 = vmul.f32 %v1754, 0.14088556
  %v1795 = vmul.f32 %v1755, 0.14088556
  %v1796 = vmul.f32 %v1756, 0.14088556
  %v1797 = vmul.f32 %v1757, 0.14088556
  %v1798 = vmul.f32 %v1758, 0.14088556
  %v1799 = vmul.f32 %v1759, 0.14088556
  %v1800 = vsub.f32 %v1760, %v1780
  %v1801 = vsub.f32 %v1761, %v1781
  %v1802 = vsub.f32 %v1762, %v1782
  %v1803 = vsub.f32 %v1763, %v1783
  %v1804 = vsub.f32 %v1764, %v1784
  %v1805 = vsub.f32 %v1765, %v1785
  %v1806 = vsub.f32 %v1766, %v1786
  %v1807 = vsub.f32 %v1767, %v1787
  %v1808 = vsub.f32 %v1768, %v1788
  %v1809 = vsub.f32 %v1769, %v1789
  %v1810 = vsub.f32 %v1770, %v1790
  %v1811 = vsub.f32 %v1771, %v1791
  %v1812 = vsub.f32 %v1772, %v1792
  %v1813 = vsub.f32 %v1773, %v1793
  %v1814 = vsub.f32 %v1774, %v1794
  %v1815 = vsub.f32 %v1775, %v1795
  %v1816 = vsub.f32 %v1776, %v1796
  %v1817 = vsub.f32 %v1777, %v1797
  %v1818 = vsub.f32 %v1778, %v1798
  %v1819 = vsub.f32 %v1779, %v1799
  %v1820 = vadd.f32 %v1700, %v1800
  %v1821 = vadd.f32 %v1701, %v1801
  %v1822 = vadd.f32 %v1702, %v1802
  %v1823 = vadd.f32 %v1703, %v1803
  %v1824 = vadd.f32 %v1704, %v1804
  %v1825 = vadd.f32 %v1705, %v1805
  %v1826 = vadd.f32 %v1706, %v1806
  %v1827 = vadd.f32 %v1707, %v1807
  %v1828 = vadd.f32 %v1708, %v1808
  %v1829 = vadd.f32 %v1709, %v1809
  %v1830 = vadd.f32 %v1710, %v1810
  %v1831 = vadd.f32 %v1711, %v1811
  %v1832 = vadd.f32 %v1712, %v1812
  %v1833 = vadd.f32 %v1713, %v1813
  %v1834 = vadd.f32 %v1714, %v1814
  %v1835 = vadd.f32 %v1715, %v1815
  %v1836 = vadd.f32 %v1716, %v1816
  %v1837 = vadd.f32 %v1717, %v1817
  %v1838 = vadd.f32 %v1718, %v1818
  %v1839 = vadd.f32 %v1719, %v1819
  %v1840 = vadd.f32 %v1396, %v1400
  %v1841 = vadd.f32 %v1397, %v1401
  %v1842 = vadd.f32 %v1398, %v1402
  %v1843 = vadd.f32 %v1399, %v1403
  %v1844 = vadd.f32 %v1400, %v1404
  %v1845 = vadd.f32 %v1401, %v1405
  %v1846 = vadd.f32 %v1402, %v1406
  %v1847 = vadd.f32 %v1403, %v1407
  %v1848 = vadd.f32 %v1404, %v1408
  %v1849 = vadd.f32 %v1405, %v1409
  %v1850 = vadd.f32 %v1406, %v1410
  %v1851 = vadd.f32 %v1407, %v1411
  %v1852 = vadd.f32 %v1408, %v1412
  %v1853 = vadd.f32 %v1409, %v1413
  %v1854 = vadd.f32 %v1410, %v1414
  %v1855 = vadd.f32 %v1411, %v1415
  %v1856 = vadd.f32 %v1412, %v1416
  %v1857 = vadd.f32 %v1413, %v1417
  %v1858 = vadd.f32 %v1414, %v1418
  %v1859 = vadd.f32 %v1415, %v1419
  %v1860 = vadd.f32 %v1572, %v1576
  %v1861 = vadd.f32 %v1573, %v1577
  %v1862 = vadd.f32 %v1574, %v1578
  %v1863 = vadd.f32 %v1575, %v1579
  %v1864 = vadd.f32 %v1576, %v1580
  %v1865 = vadd.f32 %v1577, %v1581
  %v1866 = vadd.f32 %v1578, %v1582
  %v1867 = vadd.f32 %v1579, %v1583
  %v1868 = vadd.f32 %v1580, %v1584
  %v1869 = vadd.f32 %v1581, %v1585
  %v1870 = vadd.f32 %v1582, %v1586
  %v1871 = vadd.f32 %v1583, %v1587
  %v1872 = vadd.f32 %v1584, %v1588
  %v1873 = vadd.f32 %v1585, %v1589
  %v1874 = vadd.f32 %v1586, %v1590
  %v1875 = vadd.f32 %v1587, %v1591
  %v1876 = vadd.f32 %v1588, %v1592
  %v1877 = vadd.f32 %v1589, %v1593
  %v1878 = vadd.f32 %v1590, %v1594
  %v1879 = vadd.f32 %v1591, %v1595
  %v1880 = vmul.f32 %v1840, 0.19071282
  %v1881 = vmul.f32 %v1841, 0.19071282
  %v1882 = vmul.f32 %v1842, 0.19071282
  %v1883 = vmul.f32 %v1843, 0.19071282
  %v1884 = vmul.f32 %v1844, 0.19071282
  %v1885 = vmul.f32 %v1845, 0.19071282
  %v1886 = vmul.f32 %v1846, 0.19071282
  %v1887 = vmul.f32 %v1847, 0.19071282
  %v1888 = vmul.f32 %v1848, 0.19071282
  %v1889 = vmul.f32 %v1849, 0.19071282
  %v1890 = vmul.f32 %v1850, 0.19071282
  %v1891 = vmul.f32 %v1851, 0.19071282
  %v1892 = vmul.f32 %v1852, 0.19071282
  %v1893 = vmul.f32 %v1853, 0.19071282
  %v1894 = vmul.f32 %v1854, 0.19071282
  %v1895 = vmul.f32 %v1855, 0.19071282
  %v1896 = vmul.f32 %v1856, 0.19071282
  %v1897 = vmul.f32 %v1857, 0.19071282
  %v1898 = vmul.f32 %v1858, 0.19071282
  %v1899 = vmul.f32 %v1859, 0.19071282
  %v1900 = vmul.f32 %v1860, 0.16311122
  %v1901 = vmul.f32 %v1861, 0.16311122
  %v1902 = vmul.f32 %v1862, 0.16311122
  %v1903 = vmul.f32 %v1863, 0.16311122
  %v1904 = vmul.f32 %v1864, 0.16311122
  %v1905 = vmul.f32 %v1865, 0.16311122
  %v1906 = vmul.f32 %v1866, 0.16311122
  %v1907 = vmul.f32 %v1867, 0.16311122
  %v1908 = vmul.f32 %v1868, 0.16311122
  %v1909 = vmul.f32 %v1869, 0.16311122
  %v1910 = vmul.f32 %v1870, 0.16311122
  %v1911 = vmul.f32 %v1871, 0.16311122
  %v1912 = vmul.f32 %v1872, 0.16311122
  %v1913 = vmul.f32 %v1873, 0.16311122
  %v1914 = vmul.f32 %v1874, 0.16311122
  %v1915 = vmul.f32 %v1875, 0.16311122
  %v1916 = vmul.f32 %v1876, 0.16311122
  %v1917 = vmul.f32 %v1877, 0.16311122
  %v1918 = vmul.f32 %v1878, 0.16311122
  %v1919 = vmul.f32 %v1879, 0.16311122
  %v1920 = vsub.f32 %v1880, %v1900
  %v1921 = vsub.f32 %v1881, %v1901
  %v1922 = vsub.f32 %v1882, %v1902
  %v1923 = vsub.f32 %v1883, %v1903
  %v1924 = vsub.f32 %v1884, %v1904
  %v1925 = vsub.f32 %v1885, %v1905
  %v1926 = vsub.f32 %v1886, %v1906
  %v1927 = vsub.f32 %v1887, %v1907
  %v1928 = vsub.f32 %v1888, %v1908
  %v1929 = vsub.f32 %v1889, %v1909
  %v1930 = vsub.f32 %v1890, %v1910
  %v1931 = vsub.f32 %v1891, %v1911
  %v1932 = vsub.f32 %v1892, %v1912
  %v1933 = vsub.f32 %v1893, %v1913
  %v1934 = vsub.f32 %v1894, %v1914
  %v1935 = vsub.f32 %v1895, %v1915
  %v1936 = vsub.f32 %v1896, %v1916
  %v1937 = vsub.f32 %v1897, %v1917
  %v1938 = vsub.f32 %v1898, %v1918
  %v1939 = vsub.f32 %v1899, %v1919
  %v1940 = vadd.f32 %v1820, %v1920
  %v1941 = vadd.f32 %v1821, %v1921
  %v1942 = vadd.f32 %v1822, %v1922
  %v1943 = vadd.f32 %v1823, %v1923
  %v1944 = vadd.f32 %v1824, %v1924
  %v1945 = vadd.f32 %v1825, %v1925
  %v1946 = vadd.f32 %v1826, %v1926
  %v1947 = vadd.f32 %v1827, %v1927
  %v1948 = vadd.f32 %v1828, %v1928
  %v1949 = vadd.f32 %v1829, %v1929
  %v1950 = vadd.f32 %v1830, %v1930
  %v1951 = vadd.f32 %v1831, %v1931
  %v1952 = vadd.f32 %v1832, %v1932
  %v1953 = vadd.f32 %v1833, %v1933
  %v1954 = vadd.f32 %v1834, %v1934
  %v1955 = vadd.f32 %v1835, %v1935
  %v1956 = vadd.f32 %v1836, %v1936
  %v1957 = vadd.f32 %v1837, %v1937
  %v1958 = vadd.f32 %v1838, %v1938
  %v1959 = vadd.f32 %v1839, %v1939
  %v1960 = vmul.f32 %v1398, 0.21610594
  %v1961 = vmul.f32 %v1399, 0.21610594
  %v1962 = vmul.f32 %v1400, 0.21610594
  %v1963 = vmul.f32 %v1401, 0.21610594
  %v1964 = vmul.f32 %v1402, 0.21610594
  %v1965 = vmul.f32 %v1403, 0.21610594
  %v1966 = vmul.f32 %v1404, 0.21610594
  %v1967 = vmul.f32 %v1405, 0.21610594
  %v1968 = vmul.f32 %v1406, 0.21610594
  %v1969 = vmul.f32 %v1407, 0.21610594
  %v1970 = vmul.f32 %v1408, 0.21610594
  %v1971 = vmul.f32 %v1409, 0.21610594
  %v1972 = vmul.f32 %v1410, 0.21610594
  %v1973 = vmul.f32 %v1411, 0.21610594
  %v1974 = vmul.f32 %v1412, 0.21610594
  %v1975 = vmul.f32 %v1413, 0.21610594
  %v1976 = vmul.f32 %v1414, 0.21610594
  %v1977 = vmul.f32 %v1415, 0.21610594
  %v1978 = vmul.f32 %v1416, 0.21610594
  %v1979 = vmul.f32 %v1417, 0.21610594
  %v1980 = vmul.f32 %v1574, 0.17127329
  %v1981 = vmul.f32 %v1575, 0.17127329
  %v1982 = vmul.f32 %v1576, 0.17127329
  %v1983 = vmul.f32 %v1577, 0.17127329
  %v1984 = vmul.f32 %v1578, 0.17127329
  %v1985 = vmul.f32 %v1579, 0.17127329
  %v1986 = vmul.f32 %v1580, 0.17127329
  %v1987 = vmul.f32 %v1581, 0.17127329
  %v1988 = vmul.f32 %v1582, 0.17127329
  %v1989 = vmul.f32 %v1583, 0.17127329
  %v1990 = vmul.f32 %v1584, 0.17127329
  %v1991 = vmul.f32 %v1585, 0.17127329
  %v1992 = vmul.f32 %v1586, 0.17127329
  %v1993 = vmul.f32 %v1587, 0.17127329
  %v1994 = vmul.f32 %v1588, 0.17127329
  %v1995 = vmul.f32 %v1589, 0.17127329
  %v1996 = vmul.f32 %v1590, 0.17127329
  %v1997 = vmul.f32 %v1591, 0.17127329
  %v1998 = vmul.f32 %v1592, 0.17127329
  %v1999 = vmul.f32 %v1593, 0.17127329
  %v2000 = vsub.f32 %v1960, %v1980
  %v2001 = vsub.f32 %v1961, %v1981
  %v2002 = vsub.f32 %v1962, %v1982
  %v2003 = vsub.f32 %v1963, %v1983
  %v2004 = vsub.f32 %v1964, %v1984
  %v2005 = vsub.f32 %v1965, %v1985
  %v2006 = vsub.f32 %v1966, %v1986
  %v2007 = vsub.f32 %v1967, %v1987
  %v2008 = vsub.f32 %v1968, %v1988
  %v2009 = vsub.f32 %v1969, %v1989
  %v2010 = vsub.f32 %v1970, %v1990
  %v2011 = vsub.f32 %v1971, %v1991
  %v2012 = vsub.f32 %v1972, %v1992
  %v2013 = vsub.f32 %v1973, %v1993
  %v2014 = vsub.f32 %v1974, %v1994
  %v2015 = vsub.f32 %v1975, %v1995
  %v2016 = vsub.f32 %v1976, %v1996
  %v2017 = vsub.f32 %v1977, %v1997
  %v2018 = vsub.f32 %v1978, %v1998
  %v2019 = vsub.f32 %v1979, %v1999
  %v2020 = vadd.f32 %v1940, %v2000
  %v2021 = vadd.f32 %v1941, %v2001
  %v2022 = vadd.f32 %v1942, %v2002
  %v2023 = vadd.f32 %v1943, %v2003
  %v2024 = vadd.f32 %v1944, %v2004
  %v2025 = vadd.f32 %v1945, %v2005
  %v2026 = vadd.f32 %v1946, %v2006
  %v2027 = vadd.f32 %v1947, %v2007
  %v2028 = vadd.f32 %v1948, %v2008
  %v2029 = vadd.f32 %v1949, %v2009
  %v2030 = vadd.f32 %v1950, %v2010
  %v2031 = vadd.f32 %v1951, %v2011
  %v2032 = vadd.f32 %v1952, %v2012
  %v2033 = vadd.f32 %v1953, %v2013
  %v2034 = vadd.f32 %v1954, %v2014
  %v2035 = vadd.f32 %v1955, %v2015
  %v2036 = vadd.f32 %v1956, %v2016
  %v2037 = vadd.f32 %v1957, %v2017
  %v2038 = vadd.f32 %v1958, %v2018
  %v2039 = vadd.f32 %v1959, %v2019
  %v2040 = vmax.f32 %v2020, 0.0
  %v2041 = vmax.f32 %v2021, 0.0
  %v2042 = vmax.f32 %v2022, 0.0
  %v2043 = vmax.f32 %v2023, 0.0
  %v2044 = vmax.f32 %v2024, 0.0
  %v2045 = vmax.f32 %v2025, 0.0
  %v2046 = vmax.f32 %v2026, 0.0
  %v2047 = vmax.f32 %v2027, 0.0
  %v2048 = vmax.f32 %v2028, 0.0
  %v2049 = vmax.f32 %v2029, 0.0
  %v2050 = vmax.f32 %v2030, 0.0
  %v2051 = vmax.f32 %v2031, 0.0
  %v2052 = vmax.f32 %v2032, 0.0
  %v2053 = vmax.f32 %v2033, 0.0
  %v2054 = vmax.f32 %v2034, 0.0
  %v2055 = vmax.f32 %v2035, 0.0
  %v2056 = vmax.f32 %v2036, 0.0
  %v2057 = vmax.f32 %v2037, 0.0
  %v2058 = vmax.f32 %v2038, 0.0
  %v2059 = vmax.f32 %v2039, 0.0
  %v2060 = vsub.f32 0.0, %v2020
  %v2061 = vsub.f32 0.0, %v2021
  %v2062 = vsub.f32 0.0, %v2022
  %v2063 = vsub.f32 0.0, %v2023
  %v2064 = vsub.f32 0.0, %v2024
  %v2065 = vsub.f32 0.0, %v2025
  %v2066 = vsub.f32 0.0, %v2026
  %v2067 = vsub.f32 0.0, %v2027
  %v2068 = vsub.f32 0.0, %v2028
  %v2069 = vsub.f32 0.0, %v2029
  %v2070 = vsub.f32 0.0, %v2030
  %v2071 = vsub.f32 0.0, %v2031
  %v2072 = vsub.f32 0.0, %v2032
  %v2073 = vsub.f32 0.0, %v2033
  %v2074 = vsub.f32 0.0, %v2034
  %v2075 = vsub.f32 0.0, %v2035
  %v2076 = vsub.f32 0.0, %v2036
  %v2077 = vsub.f32 0.0, %v2037
  %v2078 = vsub.f32 0.0, %v2038
  %v2079 = vsub.f32 0.0, %v2039
  %v2080 = vmax.f32 %v2060, 0.0
  %v2081 = vmax.f32 %v2061, 0.0
  %v2082 = vmax.f32 %v2062, 0.0
  %v2083 = vmax.f32 %v2063, 0.0
  %v2084 = vmax.f32 %v2064, 0.0
  %v2085 = vmax.f32 %v2065, 0.0
  %v2086 = vmax.f32 %v2066, 0.0
  %v2087 = vmax.f32 %v2067, 0.0
  %v2088 = vmax.f32 %v2068, 0.0
  %v2089 = vmax.f32 %v2069, 0.0
  %v2090 = vmax.f32 %v2070, 0.0
  %v2091 = vmax.f32 %v2071, 0.0
  %v2092 = vmax.f32 %v2072, 0.0
  %v2093 = vmax.f32 %v2073, 0.0
  %v2094 = vmax.f32 %v2074, 0.0
  %v2095 = vmax.f32 %v2075, 0.0
  %v2096 = vmax.f32 %v2076, 0.0
  %v2097 = vmax.f32 %v2077, 0.0
  %v2098 = vmax.f32 %v2078, 0.0
  %v2099 = vmax.f32 %v2079, 0.0
  %vm2100 = vcmask 64512
  %2101 = vst.msk [vmem:[%s2] sm:$0xff] %vm2100, %v2040
  %vm2102 = vcmask 58368
  %2103 = vst.msk [vmem:[%s2 + $0x8] sm:$0x3] %vm2102, %v2041
  %2104 = vst.msk [vmem:[%s2 + $0x10] sm:$0xff] %vm2100, %v2042
  %2105 = vst.msk [vmem:[%s2 + $0x18] sm:$0x3] %vm2102, %v2043
  %2106 = vst.msk [vmem:[%s2 + $0x20] sm:$0xff] %vm2100, %v2044
  %2107 = vst.msk [vmem:[%s2 + $0x28] sm:$0x3] %vm2102, %v2045
  %2108 = vst.msk [vmem:[%s2 + $0x30] sm:$0xff] %vm2100, %v2046
  %2109 = vst.msk [vmem:[%s2 + $0x38] sm:$0x3] %vm2102, %v2047
  %2110 = vst.msk [vmem:[%s2 + $0x40] sm:$0xff] %vm2100, %v2048
  %2111 = vst.msk [vmem:[%s2 + $0x48] sm:$0x3] %vm2102, %v2049
  %2112 = vst.msk [vmem:[%s2 + $0x50] sm:$0xff] %vm2100, %v2050
  %2113 = vst.msk [vmem:[%s2 + $0x58] sm:$0x3] %vm2102, %v2051
  %2114 = vst.msk [vmem:[%s2 + $0x60] sm:$0xff] %vm2100, %v2052
  %2115 = vst.msk [vmem:[%s2 + $0x68] sm:$0x3] %vm2102, %v2053
  %2116 = vst.msk [vmem:[%s2 + $0x70] sm:$0xff] %vm2100, %v2054
  %2117 = vst.msk [vmem:[%s2 + $0x78] sm:$0x3] %vm2102, %v2055
  %2118 = vst.msk [vmem:[%s2 + $0x80] sm:$0xff] %vm2100, %v2056
  %2119 = vst.msk [vmem:[%s2 + $0x88] sm:$0x3] %vm2102, %v2057
  %2120 = vst.msk [vmem:[%s2 + $0x90] sm:$0xff] %vm2100, %v2058
  %2121 = vst.msk [vmem:[%s2 + $0x98] sm:$0x3] %vm2102, %v2059
  %2122 = vst.msk [vmem:[%s3] sm:$0xff] %vm2100, %v2080
  %2123 = vst.msk [vmem:[%s3 + $0x8] sm:$0x3] %vm2102, %v2081
  %2124 = vst.msk [vmem:[%s3 + $0x10] sm:$0xff] %vm2100, %v2082
  %2125 = vst.msk [vmem:[%s3 + $0x18] sm:$0x3] %vm2102, %v2083
  %2126 = vst.msk [vmem:[%s3 + $0x20] sm:$0xff] %vm2100, %v2084
  %2127 = vst.msk [vmem:[%s3 + $0x28] sm:$0x3] %vm2102, %v2085
  %2128 = vst.msk [vmem:[%s3 + $0x30] sm:$0xff] %vm2100, %v2086
  %2129 = vst.msk [vmem:[%s3 + $0x38] sm:$0x3] %vm2102, %v2087
  %2130 = vst.msk [vmem:[%s3 + $0x40] sm:$0xff] %vm2100, %v2088
  %2131 = vst.msk [vmem:[%s3 + $0x48] sm:$0x3] %vm2102, %v2089
  %2132 = vst.msk [vmem:[%s3 + $0x50] sm:$0xff] %vm2100, %v2090
  %2133 = vst.msk [vmem:[%s3 + $0x58] sm:$0x3] %vm2102, %v2091
  %2134 = vst.msk [vmem:[%s3 + $0x60] sm:$0xff] %vm2100, %v2092
  %2135 = vst.msk [vmem:[%s3 + $0x68] sm:$0x3] %vm2102, %v2093
  %2136 = vst.msk [vmem:[%s3 + $0x70] sm:$0xff] %vm2100, %v2094
  %2137 = vst.msk [vmem:[%s3 + $0x78] sm:$0x3] %vm2102, %v2095
  %2138 = vst.msk [vmem:[%s3 + $0x80] sm:$0xff] %vm2100, %v2096
  %2139 = vst.msk [vmem:[%s3 + $0x88] sm:$0x3] %vm2102, %v2097
  %2140 = vst.msk [vmem:[%s3 + $0x90] sm:$0xff] %vm2100, %v2098
  %2141 = vst.msk [vmem:[%s3 + $0x98] sm:$0x3] %vm2102, %v2099
  %2142 = vst.msk [vmem:[%s1] sm:$0xff] %vm2100, %v2040
  %2143 = vst.msk [vmem:[%s1 + $0x8] sm:$0x3] %vm2102, %v2041
  %2144 = vst.msk [vmem:[%s1 + $0x10] sm:$0xff] %vm2100, %v2042
  %2145 = vst.msk [vmem:[%s1 + $0x18] sm:$0x3] %vm2102, %v2043
  %2146 = vst.msk [vmem:[%s1 + $0x20] sm:$0xff] %vm2100, %v2044
  %2147 = vst.msk [vmem:[%s1 + $0x28] sm:$0x3] %vm2102, %v2045
  %2148 = vst.msk [vmem:[%s1 + $0x30] sm:$0xff] %vm2100, %v2046
  %2149 = vst.msk [vmem:[%s1 + $0x38] sm:$0x3] %vm2102, %v2047
  %2150 = vst.msk [vmem:[%s1 + $0x40] sm:$0xff] %vm2100, %v2048
  %2151 = vst.msk [vmem:[%s1 + $0x48] sm:$0x3] %vm2102, %v2049
  %2152 = vst.msk [vmem:[%s1 + $0x50] sm:$0xff] %vm2100, %v2050
  %2153 = vst.msk [vmem:[%s1 + $0x58] sm:$0x3] %vm2102, %v2051
  %2154 = vst.msk [vmem:[%s1 + $0x60] sm:$0xff] %vm2100, %v2052
  %2155 = vst.msk [vmem:[%s1 + $0x68] sm:$0x3] %vm2102, %v2053
  %2156 = vst.msk [vmem:[%s1 + $0x70] sm:$0xff] %vm2100, %v2054
  %2157 = vst.msk [vmem:[%s1 + $0x78] sm:$0x3] %vm2102, %v2055
  %2158 = vst.msk [vmem:[%s1 + $0x80] sm:$0xff] %vm2100, %v2056
  %2159 = vst.msk [vmem:[%s1 + $0x88] sm:$0x3] %vm2102, %v2057
  %2160 = vst.msk [vmem:[%s1 + $0x90] sm:$0xff] %vm2100, %v2058
  %2161 = vst.msk [vmem:[%s1 + $0x98] sm:$0x3] %vm2102, %v2059
  %s2162 = scalar_lea.vmem %s1, 160
  %2163 = vst.msk [vmem:[%s2162] sm:$0xff] %vm2100, %v2080
  %2164 = vst.msk [vmem:[%s2162 + $0x8] sm:$0x3] %vm2102, %v2081
  %2165 = vst.msk [vmem:[%s2162 + $0x10] sm:$0xff] %vm2100, %v2082
  %2166 = vst.msk [vmem:[%s2162 + $0x18] sm:$0x3] %vm2102, %v2083
  %2167 = vst.msk [vmem:[%s2162 + $0x20] sm:$0xff] %vm2100, %v2084
  %2168 = vst.msk [vmem:[%s2162 + $0x28] sm:$0x3] %vm2102, %v2085
  %2169 = vst.msk [vmem:[%s2162 + $0x30] sm:$0xff] %vm2100, %v2086
  %2170 = vst.msk [vmem:[%s2162 + $0x38] sm:$0x3] %vm2102, %v2087
  %2171 = vst.msk [vmem:[%s2162 + $0x40] sm:$0xff] %vm2100, %v2088
  %2172 = vst.msk [vmem:[%s2162 + $0x48] sm:$0x3] %vm2102, %v2089
  %2173 = vst.msk [vmem:[%s2162 + $0x50] sm:$0xff] %vm2100, %v2090
  %2174 = vst.msk [vmem:[%s2162 + $0x58] sm:$0x3] %vm2102, %v2091
  %2175 = vst.msk [vmem:[%s2162 + $0x60] sm:$0xff] %vm2100, %v2092
  %2176 = vst.msk [vmem:[%s2162 + $0x68] sm:$0x3] %vm2102, %v2093
  %2177 = vst.msk [vmem:[%s2162 + $0x70] sm:$0xff] %vm2100, %v2094
  %2178 = vst.msk [vmem:[%s2162 + $0x78] sm:$0x3] %vm2102, %v2095
  %2179 = vst.msk [vmem:[%s2162 + $0x80] sm:$0xff] %vm2100, %v2096
  %2180 = vst.msk [vmem:[%s2162 + $0x88] sm:$0x3] %vm2102, %v2097
  %2181 = vst.msk [vmem:[%s2162 + $0x90] sm:$0xff] %vm2100, %v2098
  %2182 = vst.msk [vmem:[%s2162 + $0x98] sm:$0x3] %vm2102, %v2099
  // Predicated region
  $region6: #{tpu_custom_call.1} parent=0 // pred_check
    _
  $region7: #{tpu_custom_call.1} parent=0 // pred_check_branch
    %2184 = sbr.rel (0) target = $region9
  $region8: #{tpu_custom_call.1} parent=0 // pred_region
    _
  $region9: #{tpu_custom_call.1} parent=0 // pred_fallthru
    _
  // Predicated region
  $region10: #{tpu_custom_call.1} parent=0 // pred_check
    _
  $region11: #{tpu_custom_call.1} parent=0 // pred_check_branch
    %2186 = sbr.rel (0) target = $region13
  $region12: #{tpu_custom_call.1} parent=0 // pred_region
    _
  $region13: #{tpu_custom_call.1} parent=0 // pred_fallthru
    _
  // Predicated region
  $region14: #{tpu_custom_call.1} parent=0 // pred_check
    _
  $region15: #{tpu_custom_call.1} parent=0 // pred_check_branch
    %2188 = sbr.rel (0) target = $region17
  $region16: #{tpu_custom_call.1} parent=0 // pred_region
    _
  $region17: #{tpu_custom_call.1} parent=0 // pred_fallthru
    _
  // Predicated region
  $region18: #{tpu_custom_call.1} parent=0 // pred_check
    _
  $region19: #{tpu_custom_call.1} parent=0 // pred_check_branch
    %2190 = sbr.rel (0) target = $region21
  $region20: #{tpu_custom_call.1} parent=0 // pred_region
    _
  $region21: #{tpu_custom_call.1} parent=0 // pred_fallthru
    _
  // Predicated region
  $region22: #{tpu_custom_call.1} parent=0 // pred_check
    _
  $region23: #{tpu_custom_call.1} parent=0 // pred_check_branch
    %2192 = sbr.rel (0) target = $region25
  $region24: #{tpu_custom_call.1} parent=0 // pred_region
    _
  $region25: #{tpu_custom_call.1} parent=0 // pred_fallthru
    _
  // Predicated region
  $region26: #{tpu_custom_call.1} parent=0 // pred_check
    _
  $region27: #{tpu_custom_call.1} parent=0 // pred_check_branch
    %2194 = sbr.rel (0) target = $region29
  $region28: #{tpu_custom_call.1} parent=0 // pred_region
    _
  $region29: #{tpu_custom_call.1} parent=0 // pred_fallthru
    _

</llo_original>
